<compile_context>
chip_gen: v7x
topology: tpu7x:2x2x1
jax: 0.10.0
libtpu: 0.0.40
codegen_flags: <defaults>
</compile_context>

<pallas_src>
import functools
from enum import Enum

import numpy as np
import jax
import jax.numpy as jnp
from jax.experimental import pallas as pl
from jax.experimental.pallas import tpu as pltpu


# ----------------------------- graph "schema" ------------------------------
class NodeType(Enum):
    SCENE = 0
    DEMO = 1
    AGENT = 2


class EdgeType(Enum):
    AGENT_COND_AGENT = 0
    AGENT_DEMO_AGENT = 1


EDGE_TYPES = [EdgeType.AGENT_COND_AGENT, EdgeType.AGENT_DEMO_AGENT]


# --------------------------- fused Pallas kernel ----------------------------
def _phi_fused_kernel(
    x1_ref,      # [Np, in_d]   packed layer-1 node features (f32)
    res1_ref,    # [Np, hd]     layer-1 residual (zeros where not applied)
    bias1_ref,   # [H, Np, Np]  layer-1 additive bias (edge bias + -1e30 mask)
    bias2_ref,   # [H, Np, Np]  layer-2 additive bias
    wqkv1_ref, bqkv1_ref, wo1_ref, bo1_ref, g1_ref, be1_ref,   # layer-1 params
    wqkv2_ref, bqkv2_ref, wo2_ref, bo2_ref, g2_ref, be2_ref,   # layer-2 params
    o_ref,       # [Np, hd]     output (layer-2 result)
    *, num_heads, head_dim, type_ranges,
):
    hd = num_heads * head_dim
    bf16 = jnp.bfloat16

    def hetero_layer(x, res, bias, wqkv_ref, bqkv_ref, wo_ref, bo_ref, g_ref, b_ref):
        # --- per-type fused QKV projection over static contiguous row blocks ---
        qkv_parts = []
        for t, (off, cnt) in enumerate(type_ranges):
            xt = x[off:off + cnt, :].astype(bf16)
            qkv_parts.append(
                jnp.dot(xt, wqkv_ref[t], preferred_element_type=jnp.float32)
                + bqkv_ref[t])
        qkv = jnp.concatenate(qkv_parts, axis=0)                 # [Np, 3hd] f32

        scale = float(head_dim) ** -0.5
        q = qkv[:, 0 * hd:1 * hd] * scale                        # fold 1/sqrt(d) into q
        k = qkv[:, 1 * hd:2 * hd]
        v = qkv[:, 2 * hd:3 * hd]

        # --- heads on the leading (batch) axis, one batched matmul over H ---
        def split_heads(m):                                      # [Np, hd] -> [H, Np, d]
            return jnp.stack(
                [m[:, h * head_dim:(h + 1) * head_dim] for h in range(num_heads)],
                axis=0)

        qh = split_heads(q).astype(bf16)
        kh = split_heads(k).astype(bf16)
        vh = split_heads(v).astype(bf16)

        s = jax.lax.dot_general(qh, kh, (((2,), (2,)), ((0,), (0,))),
                                preferred_element_type=jnp.float32)   # [H, Np, Np]
        s = s + bias                         # single add: edge bias + -1e30 mask
        s = s - jnp.max(s, axis=-1, keepdims=True)
        p = jnp.exp(s)
        p = p * pl.reciprocal(jnp.sum(p, axis=-1, keepdims=True), approx=True)
        attn = jax.lax.dot_general(p.astype(bf16), vh,
                                   (((2,), (1,)), ((0,), (0,))),
                                   preferred_element_type=jnp.float32)  # [H, Np, d]
        merged = jnp.concatenate([attn[h] for h in range(num_heads)], axis=-1)

        # --- per-type output projection + LayerNorm + residual (fused) ---
        out_parts = []
        for t, (off, cnt) in enumerate(type_ranges):
            mt = merged[off:off + cnt, :].astype(bf16)
            zt = jnp.dot(mt, wo_ref[t], preferred_element_type=jnp.float32) + bo_ref[t]
            mean = jnp.mean(zt, axis=-1, keepdims=True)
            var = jnp.mean((zt - mean) ** 2, axis=-1, keepdims=True)
            normed = (zt - mean) * jax.lax.rsqrt(var + 1e-5)
            out_parts.append(normed * g_ref[t] + b_ref[t] + res[off:off + cnt, :])
        return jnp.concatenate(out_parts, axis=0)                # [Np, hd] f32

    z1 = hetero_layer(x1_ref[...], res1_ref[...], bias1_ref[...],
                      wqkv1_ref, bqkv1_ref, wo1_ref, bo1_ref, g1_ref, be1_ref)
    # layer 2: z1 is both the input and the residual; it never leaves VMEM.
    z2 = hetero_layer(z1, z1, bias2_ref[...],
                      wqkv2_ref, bqkv2_ref, wo2_ref, bo2_ref, g2_ref, be2_ref)
    o_ref[...] = z2


def _full_spec(shape):
    rank = len(shape)
    return pl.BlockSpec(shape, lambda i, _r=rank: (0,) * _r)


# ------------------------------ Pallas forward -------------------------------
def phi_nn_pallas(params, X, node_index_dict, A, E, edge_index_dict,
                  num_heads, head_dim):
    hd = num_heads * head_dim
    n_total = A.shape[0]

    # ---- static node layout: contiguous per-type row blocks, 8-row aligned ----
    counts, pad_offsets, pad_counts = [], [], []
    off, pad_off = 0, 0
    new_index_np = np.zeros(n_total, dtype=np.int32)
    for nt in NodeType:
        idx = np.asarray(node_index_dict[nt])
        cnt = int(idx.shape[0])
        assert cnt == 0 or (int(idx[0]) == off and np.all(np.diff(idx) == 1)), (
            "node_index_dict must list nodes contiguously in NodeType order")
        pad_cnt = max(8, ((cnt + 7) // 8) * 8)   # sublane-aligned per-type block
        if cnt:
            new_index_np[idx] = pad_off + np.arange(cnt)
        counts.append(cnt)
        pad_offsets.append(pad_off)
        pad_counts.append(pad_cnt)
        off += cnt
        pad_off += pad_cnt
    n_pad = pad_off
    new_index = jnp.asarray(new_index_np)
    type_ranges = tuple(zip(pad_offsets, pad_counts))

    # ---- additive attention bias: adjacency mask + per-edge-type edge bias ----
    A_pad = jnp.zeros((n_pad, n_pad), jnp.float32)
    A_pad = A_pad.at[new_index[:, None], new_index[None, :]].set(A.astype(jnp.float32))
    mask_bias = jnp.where(A_pad > 0, 0.0, -1e30).astype(jnp.float32)

    # TODO(synk): at large N, pass (src, dst) via scalar prefetch and accumulate the
    # edge bias inside a row-tiled kernel instead of shipping a dense [H, N, N] bias.
    def make_bias(lp):
        bias = jnp.zeros((num_heads, n_pad, n_pad), jnp.float32) + mask_bias[None]
        for et in EDGE_TYPES:
            if et not in E:
                continue
            edges = jnp.asarray(edge_index_dict[et])
            src = new_index[edges[:, 0]]
            dst = new_index[edges[:, 1]]
            eb = E[et].astype(jnp.float32) @ lp["We"][et.name] + lp["be"][et.name]
            bias = bias.at[:, dst, src].add(eb.T)
        return bias

    # ---- stacked per-type weights; MXU operands -> bf16, biases / LN stay f32 ----
    def stack_layer(lp, lnp):
        wqkv = jnp.stack([jnp.concatenate(
            [lp["Wq"][nt.name], lp["Wk"][nt.name], lp["Wv"][nt.name]], axis=1)
            for nt in NodeType]).astype(jnp.bfloat16)              # [T, in_d, 3hd]
        bqkv = jnp.stack([jnp.concatenate(
            [lp["bq"][nt.name], lp["bk"][nt.name], lp["bv"][nt.name]], axis=1)
            for nt in NodeType])                                   # [T, 1, 3hd]
        wo = jnp.stack([lp["Wo"][nt.name] for nt in NodeType]).astype(jnp.bfloat16)
        bo = jnp.stack([lp["bo"][nt.name] for nt in NodeType])     # [T, 1, hd]
        gamma = jnp.stack([lnp[nt.name]["gamma"] for nt in NodeType])  # [T, 1, hd]
        beta = jnp.stack([lnp[nt.name]["beta"] for nt in NodeType])    # [T, 1, hd]
        return wqkv, bqkv, wo, bo, gamma, beta

    # ---- packed layer-1 node features & residual ----
    in_dim = next(iter(X.values())).shape[1]
    x1 = jnp.zeros((n_pad, in_dim), jnp.float32)
    res1 = jnp.zeros((n_pad, hd), jnp.float32)
    for t, nt in enumerate(NodeType):
        xt = X[nt].astype(jnp.float32)
        po, cnt = pad_offsets[t], counts[t]
        x1 = x1.at[po:po + cnt].set(xt)
        if xt.shape == (cnt, hd):        # residual only when shapes match (module semantics)
            res1 = res1.at[po:po + cnt].set(xt)

    args = (x1, res1, make_bias(params["l1"]), make_bias(params["l2"])) \
        + stack_layer(params["l1"], params["ln1"]) \
        + stack_layer(params["l2"], params["ln2"])

    kernel = functools.partial(_phi_fused_kernel, num_heads=num_heads,
                               head_dim=head_dim, type_ranges=type_ranges)
    out_pad = pl.pallas_call(
        kernel,
        grid=(1,),
        in_specs=[_full_spec(a.shape) for a in args],
        out_specs=_full_spec((n_pad, hd)),
        out_shape=jax.ShapeDtypeStruct((n_pad, hd), jnp.float32),
        compiler_params=pltpu.CompilerParams(
            dimension_semantics=("arbitrary",)),
    )(*args)

    return {nt: out_pad[pad_offsets[t]:pad_offsets[t] + counts[t]]
            for t, nt in enumerate(NodeType)}


# ----------------------- pure-JAX reference forward --------------------------
def ref_hetero_attention_layer(lp, X, node_index_dict, A, E, edge_index_dict,
                               num_heads, head_dim):
    n_total = A.shape[0]
    hd = num_heads * head_dim
    q = jnp.zeros((n_total, hd), jnp.float32)
    k = jnp.zeros((n_total, hd), jnp.float32)
    v = jnp.zeros((n_total, hd), jnp.float32)
    for nt in NodeType:
        idx = node_index_dict[nt]
        x_t = X[nt].astype(jnp.float32)
        q = q.at[idx].set(x_t @ lp["Wq"][nt.name] + lp["bq"][nt.name])
        k = k.at[idx].set(x_t @ lp["Wk"][nt.name] + lp["bk"][nt.name])
        v = v.at[idx].set(x_t @ lp["Wv"][nt.name] + lp["bv"][nt.name])

    bias = jnp.zeros((num_heads, n_total, n_total), jnp.float32)
    for et in EDGE_TYPES:
        if et not in E:
            continue
        edges = edge_index_dict[et]
        src, dst = edges[:, 0], edges[:, 1]
        eb = E[et].astype(jnp.float32) @ lp["We"][et.name] + lp["be"][et.name]
        bias = bias.at[:, dst, src].add(eb.T)

    qh = q.reshape(n_total, num_heads, head_dim).transpose(1, 0, 2)
    kh = k.reshape(n_total, num_heads, head_dim).transpose(1, 0, 2)
    vh = v.reshape(n_total, num_heads, head_dim).transpose(1, 0, 2)
    s = jnp.einsum("hnd,hmd->hnm", qh, kh) / jnp.sqrt(jnp.float32(head_dim)) + bias
    s = jnp.where(A[None, :, :] > 0, s, jnp.float32(-1e30))
    p = jax.nn.softmax(s, axis=-1)
    attn = jnp.einsum("hnm,hmd->hnd", p, vh)
    merged = attn.transpose(1, 0, 2).reshape(n_total, hd)

    z = {}
    for nt in NodeType:
        idx = node_index_dict[nt]
        z[nt] = merged[idx] @ lp["Wo"][nt.name] + lp["bo"][nt.name]
    return z


def ref_residual_block(ln_params, X, z):
    out = {}
    for nt, zt in z.items():
        if nt.name not in ln_params:
            out[nt] = zt
            continue
        p = ln_params[nt.name]
        mean = jnp.mean(zt, axis=-1, keepdims=True)
        var = jnp.mean((zt - mean) ** 2, axis=-1, keepdims=True)
        normed = (zt - mean) * jax.lax.rsqrt(var + 1e-5) * p["gamma"] + p["beta"]
        xt = X.get(nt)
        out[nt] = normed + xt if (xt is not None and xt.shape == normed.shape) else normed
    return out


def ref_phi_nn(params, X, node_index_dict, A, E, edge_index_dict,
               num_heads, head_dim):
    z1 = ref_hetero_attention_layer(params["l1"], X, node_index_dict, A, E,
                                    edge_index_dict, num_heads, head_dim)
    z1 = ref_residual_block(params["ln1"], X, z1)
    z2 = ref_hetero_attention_layer(params["l2"], z1, node_index_dict, A, E,
                                    edge_index_dict, num_heads, head_dim)
    z2 = ref_residual_block(params["ln2"], z1, z2)
    return z2


# ------------------------------ parameter init ------------------------------
def init_phi_params(key, num_heads, head_dim, in_dim, edge_dim):
    hd = num_heads * head_dim
    k1, k2 = jax.random.split(key)

    def init_layer(k, in_d):
        lp = {n: {} for n in ("Wq", "bq", "Wk", "bk", "Wv", "bv", "Wo", "bo", "We", "be")}
        keys = iter(jax.random.split(k, 4 * len(NodeType) * 2 + len(EDGE_TYPES) * 2))
        for nt in NodeType:
            for wn, bn, fi, fo in (
                ("Wq", "bq", in_d, hd), ("Wk", "bk", in_d, hd),
                ("Wv", "bv", in_d, hd), ("Wo", "bo", hd, hd),
            ):
                lp[wn][nt.name] = 0.1 * jax.random.normal(next(keys), (fi, fo), jnp.float32)
                lp[bn][nt.name] = 0.01 * jax.random.normal(next(keys), (1, fo), jnp.float32)
        for et in EDGE_TYPES:
            lp["We"][et.name] = 0.1 * jax.random.normal(next(keys), (edge_dim, num_heads), jnp.float32)
            lp["be"][et.name] = 0.01 * jax.random.normal(next(keys), (1, num_heads), jnp.float32)
        return lp

    def init_ln():
        # PyTorch LayerNorm default init: gamma=1, beta=0
        return {
            nt.name: {"gamma": jnp.ones((1, hd), jnp.float32),
                      "beta": jnp.zeros((1, hd), jnp.float32)}
            for nt in NodeType
        }

    return {"l1": init_layer(k1, in_dim), "ln1": init_ln(),
            "l2": init_layer(k2, hd), "ln2": init_ln()}


# ----------------------------------- main ------------------------------------
if __name__ == "__main__":
    num_heads, head_dim = 2, 16
    hd = num_heads * head_dim
    edge_dim = 8

    node_counts = {NodeType.SCENE: 6, NodeType.DEMO: 6, NodeType.AGENT: 4}
    node_index_dict, off = {}, 0
    for nt in NodeType:
        node_index_dict[nt] = jnp.arange(off, off + node_counts[nt], dtype=jnp.int32)
        off += node_counts[nt]
    n_total = off  # 16

    key = jax.random.PRNGKey(0)
    keys = jax.random.split(key, 10)

    # node features (input dim == H*D so the residual branch is exercised)
    X = {
        nt: jax.random.normal(keys[i], (node_counts[nt], hd), jnp.float32)
        for i, nt in enumerate(NodeType)
    }

    # adjacency mask with self-loops
    A = (jax.random.uniform(keys[5], (n_total, n_total)) < 0.5).astype(jnp.float32)
    A = jnp.maximum(A, jnp.eye(n_total, dtype=jnp.float32))

    # edges: (src, dst) global index pairs
    agent_ids = [int(i) for i in node_index_dict[NodeType.AGENT]]
    demo_ids = [int(i) for i in node_index_dict[NodeType.DEMO]]
    cond_pairs = [(s, d) for s in agent_ids for d in agent_ids if s != d]
    demo_pairs = [(s, d) for s in demo_ids for d in agent_ids]
    edge_index_dict = {
        EdgeType.AGENT_COND_AGENT: jnp.array(cond_pairs, dtype=jnp.int32),
        EdgeType.AGENT_DEMO_AGENT: jnp.array(demo_pairs, dtype=jnp.int32),
    }
    E = {
        EdgeType.AGENT_COND_AGENT: jax.random.normal(keys[6], (len(cond_pairs), edge_dim), jnp.float32),
        EdgeType.AGENT_DEMO_AGENT: jax.random.normal(keys[7], (len(demo_pairs), edge_dim), jnp.float32),
    }
    # make sure edge-connected pairs are also connected in the adjacency mask
    for et in EDGE_TYPES:
        e = edge_index_dict[et]
        A = A.at[e[:, 1], e[:, 0]].set(1.0)

    params = init_phi_params(keys[8], num_heads, head_dim, hd, edge_dim)

    # fused Pallas forward (single pallas_call for both attention layers)
    out = phi_nn_pallas(params, X, node_index_dict, A, E, edge_index_dict,
                        num_heads, head_dim)
    out = {nt: jax.block_until_ready(v) for nt, v in out.items()}

    # pure-JAX f32 reference forward (same math, no Pallas)
    ref = ref_phi_nn(params, X, node_index_dict, A, E, edge_index_dict,
                     num_heads, head_dim)

    # bf16 MXU operands + approx-reciprocal softmax vs. the pure-f32 reference
    # give ~1% relative differences after two layers; 5e-2 tolerance covers this.
    for nt in NodeType:
        assert out[nt].shape == (node_counts[nt], hd), (nt, out[nt].shape)
        assert bool(jnp.all(jnp.isfinite(out[nt]))), f"non-finite output for {nt}"
        assert bool(jnp.allclose(out[nt], ref[nt], atol=5e-2, rtol=5e-2)), f"mismatch for {nt}"

    print("KERNEL_OK")
</pallas_src>

<mosaic_0001>
module attributes {stable_mosaic.version = 11 : i64} {
  func.func @_phi_fused_kernel(%arg0: i32, %arg1: memref<24x32xf32, #tpu.memory_space<vmem>>, %arg2: memref<24x32xf32, #tpu.memory_space<vmem>>, %arg3: memref<2x24x24xf32, #tpu.memory_space<vmem>>, %arg4: memref<2x24x24xf32, #tpu.memory_space<vmem>>, %arg5: memref<3x32x96xbf16, #tpu.memory_space<vmem>>, %arg6: memref<3x1x96xf32, #tpu.memory_space<vmem>>, %arg7: memref<3x32x32xbf16, #tpu.memory_space<vmem>>, %arg8: memref<3x1x32xf32, #tpu.memory_space<vmem>>, %arg9: memref<3x1x32xf32, #tpu.memory_space<vmem>>, %arg10: memref<3x1x32xf32, #tpu.memory_space<vmem>>, %arg11: memref<3x32x96xbf16, #tpu.memory_space<vmem>>, %arg12: memref<3x1x96xf32, #tpu.memory_space<vmem>>, %arg13: memref<3x32x32xbf16, #tpu.memory_space<vmem>>, %arg14: memref<3x1x32xf32, #tpu.memory_space<vmem>>, %arg15: memref<3x1x32xf32, #tpu.memory_space<vmem>>, %arg16: memref<3x1x32xf32, #tpu.memory_space<vmem>>, %arg17: memref<24x32xf32, #tpu.memory_space<vmem>>) attributes {dimension_semantics = [#tpu.dimension_semantics<arbitrary>], iteration_bounds = array<i64: 1>, scalar_prefetch = 0 : i64, scratch_operands = 0 : i64, tpu.core_type = #tpu.core_type<tc>, window_params = [{pipeline_mode = #tpu.pipeline_mode<synchronous>, transform_indices = @transform_0, window_bounds = array<i64: 24, 32>}, {pipeline_mode = #tpu.pipeline_mode<synchronous>, transform_indices = @transform_1, window_bounds = array<i64: 24, 32>}, {pipeline_mode = #tpu.pipeline_mode<synchronous>, transform_indices = @transform_2, window_bounds = array<i64: 2, 24, 24>}, {pipeline_mode = #tpu.pipeline_mode<synchronous>, transform_indices = @transform_3, window_bounds = array<i64: 2, 24, 24>}, {pipeline_mode = #tpu.pipeline_mode<synchronous>, transform_indices = @transform_4, window_bounds = array<i64: 3, 32, 96>}, {pipeline_mode = #tpu.pipeline_mode<synchronous>, transform_indices = @transform_5, window_bounds = array<i64: 3, 1, 96>}, {pipeline_mode = #tpu.pipeline_mode<synchronous>, transform_indices = @transform_6, window_bounds = array<i64: 3, 32, 32>}, {pipeline_mode = #tpu.pipeline_mode<synchronous>, transform_indices = @transform_7, window_bounds = array<i64: 3, 1, 32>}, {pipeline_mode = #tpu.pipeline_mode<synchronous>, transform_indices = @transform_8, window_bounds = array<i64: 3, 1, 32>}, {pipeline_mode = #tpu.pipeline_mode<synchronous>, transform_indices = @transform_9, window_bounds = array<i64: 3, 1, 32>}, {pipeline_mode = #tpu.pipeline_mode<synchronous>, transform_indices = @transform_10, window_bounds = array<i64: 3, 32, 96>}, {pipeline_mode = #tpu.pipeline_mode<synchronous>, transform_indices = @transform_11, window_bounds = array<i64: 3, 1, 96>}, {pipeline_mode = #tpu.pipeline_mode<synchronous>, transform_indices = @transform_12, window_bounds = array<i64: 3, 32, 32>}, {pipeline_mode = #tpu.pipeline_mode<synchronous>, transform_indices = @transform_13, window_bounds = array<i64: 3, 1, 32>}, {pipeline_mode = #tpu.pipeline_mode<synchronous>, transform_indices = @transform_14, window_bounds = array<i64: 3, 1, 32>}, {pipeline_mode = #tpu.pipeline_mode<synchronous>, transform_indices = @transform_15, window_bounds = array<i64: 3, 1, 32>}, {pipeline_mode = #tpu.pipeline_mode<synchronous>, transform_indices = @transform_16, window_bounds = array<i64: 24, 32>}]} {
    %c0 = arith.constant 0 : index
    %c0_0 = arith.constant 0 : index
    %0 = vector.load %arg1[%c0, %c0_0] : memref<24x32xf32, #tpu.memory_space<vmem>>, vector<24x32xf32>
    %c0_1 = arith.constant 0 : index
    %c0_2 = arith.constant 0 : index
    %1 = vector.load %arg2[%c0_1, %c0_2] : memref<24x32xf32, #tpu.memory_space<vmem>>, vector<24x32xf32>
    %c0_3 = arith.constant 0 : index
    %c0_4 = arith.constant 0 : index
    %c0_5 = arith.constant 0 : index
    %2 = vector.load %arg3[%c0_3, %c0_4, %c0_5] : memref<2x24x24xf32, #tpu.memory_space<vmem>>, vector<2x24x24xf32>
    %3 = vector.extract_strided_slice %0 {offsets = [0, 0], sizes = [8, 32], strides = [1, 1]} : vector<24x32xf32> to vector<8x32xf32>
    %4 = arith.truncf %3 : vector<8x32xf32> to vector<8x32xbf16>
    %c0_6 = arith.constant 0 : index
    %c0_7 = arith.constant 0 : index
    %c0_8 = arith.constant 0 : index
    %5 = vector.load %arg5[%c0_6, %c0_7, %c0_8] : memref<3x32x96xbf16, #tpu.memory_space<vmem>>, vector<1x32x96xbf16>
    %6 = vector.shape_cast %5 : vector<1x32x96xbf16> to vector<32x96xbf16>
    %cst = arith.constant dense<0.000000e+00> : vector<8x96xf32>
    %7 = tpu.matmul %4, %6, %cst {dimension_numbers = #tpu.dot_dimension_numbers<[1], [0], [0], [1], [0, 0, 1, 1], [], []>} : vector<8x32xbf16>, vector<32x96xbf16>, vector<8x96xf32> -> vector<8x96xf32>
    %c0_9 = arith.constant 0 : index
    %c0_10 = arith.constant 0 : index
    %c0_11 = arith.constant 0 : index
    %8 = vector.load %arg6[%c0_9, %c0_10, %c0_11] : memref<3x1x96xf32, #tpu.memory_space<vmem>>, vector<1x1x96xf32>
    %9 = vector.shape_cast %8 : vector<1x1x96xf32> to vector<1x96xf32>
    %10 = vector.broadcast %9 : vector<1x96xf32> to vector<8x96xf32>
    %11 = arith.addf %7, %10 : vector<8x96xf32>
    %12 = vector.extract_strided_slice %0 {offsets = [8, 0], sizes = [8, 32], strides = [1, 1]} : vector<24x32xf32> to vector<8x32xf32>
    %13 = arith.truncf %12 : vector<8x32xf32> to vector<8x32xbf16>
    %c1 = arith.constant 1 : index
    %c0_12 = arith.constant 0 : index
    %c0_13 = arith.constant 0 : index
    %14 = vector.load %arg5[%c1, %c0_12, %c0_13] : memref<3x32x96xbf16, #tpu.memory_space<vmem>>, vector<1x32x96xbf16>
    %15 = vector.shape_cast %14 : vector<1x32x96xbf16> to vector<32x96xbf16>
    %cst_14 = arith.constant dense<0.000000e+00> : vector<8x96xf32>
    %16 = tpu.matmul %13, %15, %cst_14 {dimension_numbers = #tpu.dot_dimension_numbers<[1], [0], [0], [1], [0, 0, 1, 1], [], []>} : vector<8x32xbf16>, vector<32x96xbf16>, vector<8x96xf32> -> vector<8x96xf32>
    %c1_15 = arith.constant 1 : index
    %c0_16 = arith.constant 0 : index
    %c0_17 = arith.constant 0 : index
    %17 = vector.load %arg6[%c1_15, %c0_16, %c0_17] : memref<3x1x96xf32, #tpu.memory_space<vmem>>, vector<1x1x96xf32>
    %18 = vector.shape_cast %17 : vector<1x1x96xf32> to vector<1x96xf32>
    %19 = vector.broadcast %18 : vector<1x96xf32> to vector<8x96xf32>
    %20 = arith.addf %16, %19 : vector<8x96xf32>
    %21 = vector.extract_strided_slice %0 {offsets = [16, 0], sizes = [8, 32], strides = [1, 1]} : vector<24x32xf32> to vector<8x32xf32>
    %22 = arith.truncf %21 : vector<8x32xf32> to vector<8x32xbf16>
    %c2 = arith.constant 2 : index
    %c0_18 = arith.constant 0 : index
    %c0_19 = arith.constant 0 : index
    %23 = vector.load %arg5[%c2, %c0_18, %c0_19] : memref<3x32x96xbf16, #tpu.memory_space<vmem>>, vector<1x32x96xbf16>
    %24 = vector.shape_cast %23 : vector<1x32x96xbf16> to vector<32x96xbf16>
    %cst_20 = arith.constant dense<0.000000e+00> : vector<8x96xf32>
    %25 = tpu.matmul %22, %24, %cst_20 {dimension_numbers = #tpu.dot_dimension_numbers<[1], [0], [0], [1], [0, 0, 1, 1], [], []>} : vector<8x32xbf16>, vector<32x96xbf16>, vector<8x96xf32> -> vector<8x96xf32>
    %c2_21 = arith.constant 2 : index
    %c0_22 = arith.constant 0 : index
    %c0_23 = arith.constant 0 : index
    %26 = vector.load %arg6[%c2_21, %c0_22, %c0_23] : memref<3x1x96xf32, #tpu.memory_space<vmem>>, vector<1x1x96xf32>
    %27 = vector.shape_cast %26 : vector<1x1x96xf32> to vector<1x96xf32>
    %28 = vector.broadcast %27 : vector<1x96xf32> to vector<8x96xf32>
    %29 = arith.addf %25, %28 : vector<8x96xf32>
    %30 = tpu.concatenate %11, %20, %29 in 0 : vector<8x96xf32>, vector<8x96xf32>, vector<8x96xf32> -> vector<24x96xf32>
    %31 = vector.extract_strided_slice %30 {offsets = [0, 0], sizes = [24, 32], strides = [1, 1]} : vector<24x96xf32> to vector<24x32xf32>
    %cst_24 = arith.constant 2.500000e-01 : f32
    %32 = vector.broadcast %cst_24 : f32 to vector<24x32xf32>
    %33 = arith.mulf %31, %32 : vector<24x32xf32>
    %34 = vector.extract_strided_slice %30 {offsets = [0, 32], sizes = [24, 32], strides = [1, 1]} : vector<24x96xf32> to vector<24x32xf32>
    %35 = vector.extract_strided_slice %30 {offsets = [0, 64], sizes = [24, 32], strides = [1, 1]} : vector<24x96xf32> to vector<24x32xf32>
    %36 = vector.extract_strided_slice %33 {offsets = [0, 0], sizes = [24, 16], strides = [1, 1]} : vector<24x32xf32> to vector<24x16xf32>
    %37 = vector.extract_strided_slice %33 {offsets = [0, 16], sizes = [24, 16], strides = [1, 1]} : vector<24x32xf32> to vector<24x16xf32>
    %38 = vector.shape_cast %36 : vector<24x16xf32> to vector<1x24x16xf32>
    %39 = vector.shape_cast %37 : vector<24x16xf32> to vector<1x24x16xf32>
    %40 = tpu.concatenate %38, %39 in 0 : vector<1x24x16xf32>, vector<1x24x16xf32> -> vector<2x24x16xf32>
    %41 = arith.truncf %40 : vector<2x24x16xf32> to vector<2x24x16xbf16>
    %42 = vector.extract_strided_slice %34 {offsets = [0, 0], sizes = [24, 16], strides = [1, 1]} : vector<24x32xf32> to vector<24x16xf32>
    %43 = vector.extract_strided_slice %34 {offsets = [0, 16], sizes = [24, 16], strides = [1, 1]} : vector<24x32xf32> to vector<24x16xf32>
    %44 = vector.shape_cast %42 : vector<24x16xf32> to vector<1x24x16xf32>
    %45 = vector.shape_cast %43 : vector<24x16xf32> to vector<1x24x16xf32>
    %46 = tpu.concatenate %44, %45 in 0 : vector<1x24x16xf32>, vector<1x24x16xf32> -> vector<2x24x16xf32>
    %47 = arith.truncf %46 : vector<2x24x16xf32> to vector<2x24x16xbf16>
    %48 = vector.extract_strided_slice %35 {offsets = [0, 0], sizes = [24, 16], strides = [1, 1]} : vector<24x32xf32> to vector<24x16xf32>
    %49 = vector.extract_strided_slice %35 {offsets = [0, 16], sizes = [24, 16], strides = [1, 1]} : vector<24x32xf32> to vector<24x16xf32>
    %50 = vector.shape_cast %48 : vector<24x16xf32> to vector<1x24x16xf32>
    %51 = vector.shape_cast %49 : vector<24x16xf32> to vector<1x24x16xf32>
    %52 = tpu.concatenate %50, %51 in 0 : vector<1x24x16xf32>, vector<1x24x16xf32> -> vector<2x24x16xf32>
    %53 = arith.truncf %52 : vector<2x24x16xf32> to vector<2x24x16xbf16>
    %cst_25 = arith.constant dense<0.000000e+00> : vector<2x24x24xf32>
    %54 = tpu.matmul %41, %47, %cst_25 {dimension_numbers = #tpu.dot_dimension_numbers<[2], [2], [1], [1], [0, 0, 0, 1, 1, 1], [0], [0]>} : vector<2x24x16xbf16>, vector<2x24x16xbf16>, vector<2x24x24xf32> -> vector<2x24x24xf32>
    %55 = arith.addf %54, %2 : vector<2x24x24xf32>
    %cst_26 = arith.constant dense<0xFF800000> : vector<2x24xf32>
    %56 = vector.multi_reduction <maximumf>, %55, %cst_26 [2] : vector<2x24x24xf32> to vector<2x24xf32>
    %57 = vector.shape_cast %56 : vector<2x24xf32> to vector<2x24x1xf32>
    %58 = vector.broadcast %57 : vector<2x24x1xf32> to vector<2x24x24xf32>
    %59 = arith.subf %55, %58 : vector<2x24x24xf32>
    %60 = math.exp %59 : vector<2x24x24xf32>
    %cst_27 = arith.constant dense<0.000000e+00> : vector<2x24xf32>
    %61 = vector.multi_reduction <add>, %60, %cst_27 [2] : vector<2x24x24xf32> to vector<2x24xf32>
    %62 = vector.shape_cast %61 : vector<2x24xf32> to vector<2x24x1xf32>
    %63 = tpu.reciprocal %62 {approx = true} : vector<2x24x1xf32> -> vector<2x24x1xf32>
    %64 = vector.broadcast %63 : vector<2x24x1xf32> to vector<2x24x24xf32>
    %65 = arith.mulf %60, %64 : vector<2x24x24xf32>
    %66 = arith.truncf %65 : vector<2x24x24xf32> to vector<2x24x24xbf16>
    %cst_28 = arith.constant dense<0.000000e+00> : vector<2x24x16xf32>
    %67 = tpu.matmul %66, %53, %cst_28 {dimension_numbers = #tpu.dot_dimension_numbers<[2], [1], [1], [2], [0, 0, 0, 1, 1, 2], [0], [0]>} : vector<2x24x24xbf16>, vector<2x24x16xbf16>, vector<2x24x16xf32> -> vector<2x24x16xf32>
    %68 = vector.extract_strided_slice %67 {offsets = [0, 0, 0], sizes = [1, 24, 16], strides = [1, 1, 1]} : vector<2x24x16xf32> to vector<1x24x16xf32>
    %69 = vector.shape_cast %68 : vector<1x24x16xf32> to vector<24x16xf32>
    %70 = vector.extract_strided_slice %67 {offsets = [1, 0, 0], sizes = [1, 24, 16], strides = [1, 1, 1]} : vector<2x24x16xf32> to vector<1x24x16xf32>
    %71 = vector.shape_cast %70 : vector<1x24x16xf32> to vector<24x16xf32>
    %72 = tpu.concatenate %69, %71 in 1 : vector<24x16xf32>, vector<24x16xf32> -> vector<24x32xf32>
    %73 = vector.extract_strided_slice %72 {offsets = [0, 0], sizes = [8, 32], strides = [1, 1]} : vector<24x32xf32> to vector<8x32xf32>
    %74 = arith.truncf %73 : vector<8x32xf32> to vector<8x32xbf16>
    %c0_29 = arith.constant 0 : index
    %c0_30 = arith.constant 0 : index
    %c0_31 = arith.constant 0 : index
    %75 = vector.load %arg7[%c0_29, %c0_30, %c0_31] : memref<3x32x32xbf16, #tpu.memory_space<vmem>>, vector<1x32x32xbf16>
    %76 = vector.shape_cast %75 : vector<1x32x32xbf16> to vector<32x32xbf16>
    %cst_32 = arith.constant dense<0.000000e+00> : vector<8x32xf32>
    %77 = tpu.matmul %74, %76, %cst_32 {dimension_numbers = #tpu.dot_dimension_numbers<[1], [0], [0], [1], [0, 0, 1, 1], [], []>} : vector<8x32xbf16>, vector<32x32xbf16>, vector<8x32xf32> -> vector<8x32xf32>
    %c0_33 = arith.constant 0 : index
    %c0_34 = arith.constant 0 : index
    %c0_35 = arith.constant 0 : index
    %78 = vector.load %arg8[%c0_33, %c0_34, %c0_35] : memref<3x1x32xf32, #tpu.memory_space<vmem>>, vector<1x1x32xf32>
    %79 = vector.shape_cast %78 : vector<1x1x32xf32> to vector<1x32xf32>
    %80 = vector.broadcast %79 : vector<1x32xf32> to vector<8x32xf32>
    %81 = arith.addf %77, %80 : vector<8x32xf32>
    %cst_36 = arith.constant dense<0.000000e+00> : vector<8xf32>
    %82 = vector.multi_reduction <add>, %81, %cst_36 [1] : vector<8x32xf32> to vector<8xf32>
    %83 = vector.shape_cast %82 : vector<8xf32> to vector<8x1xf32>
    %cst_37 = arith.constant 3.200000e+01 : f32
    %84 = vector.broadcast %cst_37 : f32 to vector<8x1xf32>
    %85 = arith.divf %83, %84 : vector<8x1xf32>
    %86 = vector.broadcast %85 : vector<8x1xf32> to vector<8x32xf32>
    %87 = arith.subf %81, %86 : vector<8x32xf32>
    %88 = arith.mulf %87, %87 : vector<8x32xf32>
    %cst_38 = arith.constant dense<0.000000e+00> : vector<8xf32>
    %89 = vector.multi_reduction <add>, %88, %cst_38 [1] : vector<8x32xf32> to vector<8xf32>
    %90 = vector.shape_cast %89 : vector<8xf32> to vector<8x1xf32>
    %cst_39 = arith.constant 3.200000e+01 : f32
    %91 = vector.broadcast %cst_39 : f32 to vector<8x1xf32>
    %92 = arith.divf %90, %91 : vector<8x1xf32>
    %93 = vector.broadcast %85 : vector<8x1xf32> to vector<8x32xf32>
    %94 = arith.subf %81, %93 : vector<8x32xf32>
    %cst_40 = arith.constant 9.99999974E-6 : f32
    %95 = vector.broadcast %cst_40 : f32 to vector<8x1xf32>
    %96 = arith.addf %92, %95 : vector<8x1xf32>
    %97 = math.rsqrt %96 : vector<8x1xf32>
    %98 = vector.broadcast %97 : vector<8x1xf32> to vector<8x32xf32>
    %99 = arith.mulf %94, %98 : vector<8x32xf32>
    %c0_41 = arith.constant 0 : index
    %c0_42 = arith.constant 0 : index
    %c0_43 = arith.constant 0 : index
    %100 = vector.load %arg9[%c0_41, %c0_42, %c0_43] : memref<3x1x32xf32, #tpu.memory_space<vmem>>, vector<1x1x32xf32>
    %101 = vector.shape_cast %100 : vector<1x1x32xf32> to vector<1x32xf32>
    %102 = vector.broadcast %101 : vector<1x32xf32> to vector<8x32xf32>
    %103 = arith.mulf %99, %102 : vector<8x32xf32>
    %c0_44 = arith.constant 0 : index
    %c0_45 = arith.constant 0 : index
    %c0_46 = arith.constant 0 : index
    %104 = vector.load %arg10[%c0_44, %c0_45, %c0_46] : memref<3x1x32xf32, #tpu.memory_space<vmem>>, vector<1x1x32xf32>
    %105 = vector.shape_cast %104 : vector<1x1x32xf32> to vector<1x32xf32>
    %106 = vector.broadcast %105 : vector<1x32xf32> to vector<8x32xf32>
    %107 = arith.addf %103, %106 : vector<8x32xf32>
    %108 = vector.extract_strided_slice %1 {offsets = [0, 0], sizes = [8, 32], strides = [1, 1]} : vector<24x32xf32> to vector<8x32xf32>
    %109 = arith.addf %107, %108 : vector<8x32xf32>
    %110 = vector.extract_strided_slice %72 {offsets = [8, 0], sizes = [8, 32], strides = [1, 1]} : vector<24x32xf32> to vector<8x32xf32>
    %111 = arith.truncf %110 : vector<8x32xf32> to vector<8x32xbf16>
    %c1_47 = arith.constant 1 : index
    %c0_48 = arith.constant 0 : index
    %c0_49 = arith.constant 0 : index
    %112 = vector.load %arg7[%c1_47, %c0_48, %c0_49] : memref<3x32x32xbf16, #tpu.memory_space<vmem>>, vector<1x32x32xbf16>
    %113 = vector.shape_cast %112 : vector<1x32x32xbf16> to vector<32x32xbf16>
    %cst_50 = arith.constant dense<0.000000e+00> : vector<8x32xf32>
    %114 = tpu.matmul %111, %113, %cst_50 {dimension_numbers = #tpu.dot_dimension_numbers<[1], [0], [0], [1], [0, 0, 1, 1], [], []>} : vector<8x32xbf16>, vector<32x32xbf16>, vector<8x32xf32> -> vector<8x32xf32>
    %c1_51 = arith.constant 1 : index
    %c0_52 = arith.constant 0 : index
    %c0_53 = arith.constant 0 : index
    %115 = vector.load %arg8[%c1_51, %c0_52, %c0_53] : memref<3x1x32xf32, #tpu.memory_space<vmem>>, vector<1x1x32xf32>
    %116 = vector.shape_cast %115 : vector<1x1x32xf32> to vector<1x32xf32>
    %117 = vector.broadcast %116 : vector<1x32xf32> to vector<8x32xf32>
    %118 = arith.addf %114, %117 : vector<8x32xf32>
    %cst_54 = arith.constant dense<0.000000e+00> : vector<8xf32>
    %119 = vector.multi_reduction <add>, %118, %cst_54 [1] : vector<8x32xf32> to vector<8xf32>
    %120 = vector.shape_cast %119 : vector<8xf32> to vector<8x1xf32>
    %cst_55 = arith.constant 3.200000e+01 : f32
    %121 = vector.broadcast %cst_55 : f32 to vector<8x1xf32>
    %122 = arith.divf %120, %121 : vector<8x1xf32>
    %123 = vector.broadcast %122 : vector<8x1xf32> to vector<8x32xf32>
    %124 = arith.subf %118, %123 : vector<8x32xf32>
    %125 = arith.mulf %124, %124 : vector<8x32xf32>
    %cst_56 = arith.constant dense<0.000000e+00> : vector<8xf32>
    %126 = vector.multi_reduction <add>, %125, %cst_56 [1] : vector<8x32xf32> to vector<8xf32>
    %127 = vector.shape_cast %126 : vector<8xf32> to vector<8x1xf32>
    %cst_57 = arith.constant 3.200000e+01 : f32
    %128 = vector.broadcast %cst_57 : f32 to vector<8x1xf32>
    %129 = arith.divf %127, %128 : vector<8x1xf32>
    %130 = vector.broadcast %122 : vector<8x1xf32> to vector<8x32xf32>
    %131 = arith.subf %118, %130 : vector<8x32xf32>
    %cst_58 = arith.constant 9.99999974E-6 : f32
    %132 = vector.broadcast %cst_58 : f32 to vector<8x1xf32>
    %133 = arith.addf %129, %132 : vector<8x1xf32>
    %134 = math.rsqrt %133 : vector<8x1xf32>
    %135 = vector.broadcast %134 : vector<8x1xf32> to vector<8x32xf32>
    %136 = arith.mulf %131, %135 : vector<8x32xf32>
    %c1_59 = arith.constant 1 : index
    %c0_60 = arith.constant 0 : index
    %c0_61 = arith.constant 0 : index
    %137 = vector.load %arg9[%c1_59, %c0_60, %c0_61] : memref<3x1x32xf32, #tpu.memory_space<vmem>>, vector<1x1x32xf32>
    %138 = vector.shape_cast %137 : vector<1x1x32xf32> to vector<1x32xf32>
    %139 = vector.broadcast %138 : vector<1x32xf32> to vector<8x32xf32>
    %140 = arith.mulf %136, %139 : vector<8x32xf32>
    %c1_62 = arith.constant 1 : index
    %c0_63 = arith.constant 0 : index
    %c0_64 = arith.constant 0 : index
    %141 = vector.load %arg10[%c1_62, %c0_63, %c0_64] : memref<3x1x32xf32, #tpu.memory_space<vmem>>, vector<1x1x32xf32>
    %142 = vector.shape_cast %141 : vector<1x1x32xf32> to vector<1x32xf32>
    %143 = vector.broadcast %142 : vector<1x32xf32> to vector<8x32xf32>
    %144 = arith.addf %140, %143 : vector<8x32xf32>
    %145 = vector.extract_strided_slice %1 {offsets = [8, 0], sizes = [8, 32], strides = [1, 1]} : vector<24x32xf32> to vector<8x32xf32>
    %146 = arith.addf %144, %145 : vector<8x32xf32>
    %147 = vector.extract_strided_slice %72 {offsets = [16, 0], sizes = [8, 32], strides = [1, 1]} : vector<24x32xf32> to vector<8x32xf32>
    %148 = arith.truncf %147 : vector<8x32xf32> to vector<8x32xbf16>
    %c2_65 = arith.constant 2 : index
    %c0_66 = arith.constant 0 : index
    %c0_67 = arith.constant 0 : index
    %149 = vector.load %arg7[%c2_65, %c0_66, %c0_67] : memref<3x32x32xbf16, #tpu.memory_space<vmem>>, vector<1x32x32xbf16>
    %150 = vector.shape_cast %149 : vector<1x32x32xbf16> to vector<32x32xbf16>
    %cst_68 = arith.constant dense<0.000000e+00> : vector<8x32xf32>
    %151 = tpu.matmul %148, %150, %cst_68 {dimension_numbers = #tpu.dot_dimension_numbers<[1], [0], [0], [1], [0, 0, 1, 1], [], []>} : vector<8x32xbf16>, vector<32x32xbf16>, vector<8x32xf32> -> vector<8x32xf32>
    %c2_69 = arith.constant 2 : index
    %c0_70 = arith.constant 0 : index
    %c0_71 = arith.constant 0 : index
    %152 = vector.load %arg8[%c2_69, %c0_70, %c0_71] : memref<3x1x32xf32, #tpu.memory_space<vmem>>, vector<1x1x32xf32>
    %153 = vector.shape_cast %152 : vector<1x1x32xf32> to vector<1x32xf32>
    %154 = vector.broadcast %153 : vector<1x32xf32> to vector<8x32xf32>
    %155 = arith.addf %151, %154 : vector<8x32xf32>
    %cst_72 = arith.constant dense<0.000000e+00> : vector<8xf32>
    %156 = vector.multi_reduction <add>, %155, %cst_72 [1] : vector<8x32xf32> to vector<8xf32>
    %157 = vector.shape_cast %156 : vector<8xf32> to vector<8x1xf32>
    %cst_73 = arith.constant 3.200000e+01 : f32
    %158 = vector.broadcast %cst_73 : f32 to vector<8x1xf32>
    %159 = arith.divf %157, %158 : vector<8x1xf32>
    %160 = vector.broadcast %159 : vector<8x1xf32> to vector<8x32xf32>
    %161 = arith.subf %155, %160 : vector<8x32xf32>
    %162 = arith.mulf %161, %161 : vector<8x32xf32>
    %cst_74 = arith.constant dense<0.000000e+00> : vector<8xf32>
    %163 = vector.multi_reduction <add>, %162, %cst_74 [1] : vector<8x32xf32> to vector<8xf32>
    %164 = vector.shape_cast %163 : vector<8xf32> to vector<8x1xf32>
    %cst_75 = arith.constant 3.200000e+01 : f32
    %165 = vector.broadcast %cst_75 : f32 to vector<8x1xf32>
    %166 = arith.divf %164, %165 : vector<8x1xf32>
    %167 = vector.broadcast %159 : vector<8x1xf32> to vector<8x32xf32>
    %168 = arith.subf %155, %167 : vector<8x32xf32>
    %cst_76 = arith.constant 9.99999974E-6 : f32
    %169 = vector.broadcast %cst_76 : f32 to vector<8x1xf32>
    %170 = arith.addf %166, %169 : vector<8x1xf32>
    %171 = math.rsqrt %170 : vector<8x1xf32>
    %172 = vector.broadcast %171 : vector<8x1xf32> to vector<8x32xf32>
    %173 = arith.mulf %168, %172 : vector<8x32xf32>
    %c2_77 = arith.constant 2 : index
    %c0_78 = arith.constant 0 : index
    %c0_79 = arith.constant 0 : index
    %174 = vector.load %arg9[%c2_77, %c0_78, %c0_79] : memref<3x1x32xf32, #tpu.memory_space<vmem>>, vector<1x1x32xf32>
    %175 = vector.shape_cast %174 : vector<1x1x32xf32> to vector<1x32xf32>
    %176 = vector.broadcast %175 : vector<1x32xf32> to vector<8x32xf32>
    %177 = arith.mulf %173, %176 : vector<8x32xf32>
    %c2_80 = arith.constant 2 : index
    %c0_81 = arith.constant 0 : index
    %c0_82 = arith.constant 0 : index
    %178 = vector.load %arg10[%c2_80, %c0_81, %c0_82] : memref<3x1x32xf32, #tpu.memory_space<vmem>>, vector<1x1x32xf32>
    %179 = vector.shape_cast %178 : vector<1x1x32xf32> to vector<1x32xf32>
    %180 = vector.broadcast %179 : vector<1x32xf32> to vector<8x32xf32>
    %181 = arith.addf %177, %180 : vector<8x32xf32>
    %182 = vector.extract_strided_slice %1 {offsets = [16, 0], sizes = [8, 32], strides = [1, 1]} : vector<24x32xf32> to vector<8x32xf32>
    %183 = arith.addf %181, %182 : vector<8x32xf32>
    %184 = tpu.concatenate %109, %146, %183 in 0 : vector<8x32xf32>, vector<8x32xf32>, vector<8x32xf32> -> vector<24x32xf32>
    %c0_83 = arith.constant 0 : index
    %c0_84 = arith.constant 0 : index
    %c0_85 = arith.constant 0 : index
    %185 = vector.load %arg4[%c0_83, %c0_84, %c0_85] : memref<2x24x24xf32, #tpu.memory_space<vmem>>, vector<2x24x24xf32>
    %186 = vector.extract_strided_slice %184 {offsets = [0, 0], sizes = [8, 32], strides = [1, 1]} : vector<24x32xf32> to vector<8x32xf32>
    %187 = arith.truncf %186 : vector<8x32xf32> to vector<8x32xbf16>
    %c0_86 = arith.constant 0 : index
    %c0_87 = arith.constant 0 : index
    %c0_88 = arith.constant 0 : index
    %188 = vector.load %arg11[%c0_86, %c0_87, %c0_88] : memref<3x32x96xbf16, #tpu.memory_space<vmem>>, vector<1x32x96xbf16>
    %189 = vector.shape_cast %188 : vector<1x32x96xbf16> to vector<32x96xbf16>
    %cst_89 = arith.constant dense<0.000000e+00> : vector<8x96xf32>
    %190 = tpu.matmul %187, %189, %cst_89 {dimension_numbers = #tpu.dot_dimension_numbers<[1], [0], [0], [1], [0, 0, 1, 1], [], []>} : vector<8x32xbf16>, vector<32x96xbf16>, vector<8x96xf32> -> vector<8x96xf32>
    %c0_90 = arith.constant 0 : index
    %c0_91 = arith.constant 0 : index
    %c0_92 = arith.constant 0 : index
    %191 = vector.load %arg12[%c0_90, %c0_91, %c0_92] : memref<3x1x96xf32, #tpu.memory_space<vmem>>, vector<1x1x96xf32>
    %192 = vector.shape_cast %191 : vector<1x1x96xf32> to vector<1x96xf32>
    %193 = vector.broadcast %192 : vector<1x96xf32> to vector<8x96xf32>
    %194 = arith.addf %190, %193 : vector<8x96xf32>
    %195 = vector.extract_strided_slice %184 {offsets = [8, 0], sizes = [8, 32], strides = [1, 1]} : vector<24x32xf32> to vector<8x32xf32>
    %196 = arith.truncf %195 : vector<8x32xf32> to vector<8x32xbf16>
    %c1_93 = arith.constant 1 : index
    %c0_94 = arith.constant 0 : index
    %c0_95 = arith.constant 0 : index
    %197 = vector.load %arg11[%c1_93, %c0_94, %c0_95] : memref<3x32x96xbf16, #tpu.memory_space<vmem>>, vector<1x32x96xbf16>
    %198 = vector.shape_cast %197 : vector<1x32x96xbf16> to vector<32x96xbf16>
    %cst_96 = arith.constant dense<0.000000e+00> : vector<8x96xf32>
    %199 = tpu.matmul %196, %198, %cst_96 {dimension_numbers = #tpu.dot_dimension_numbers<[1], [0], [0], [1], [0, 0, 1, 1], [], []>} : vector<8x32xbf16>, vector<32x96xbf16>, vector<8x96xf32> -> vector<8x96xf32>
    %c1_97 = arith.constant 1 : index
    %c0_98 = arith.constant 0 : index
    %c0_99 = arith.constant 0 : index
    %200 = vector.load %arg12[%c1_97, %c0_98, %c0_99] : memref<3x1x96xf32, #tpu.memory_space<vmem>>, vector<1x1x96xf32>
    %201 = vector.shape_cast %200 : vector<1x1x96xf32> to vector<1x96xf32>
    %202 = vector.broadcast %201 : vector<1x96xf32> to vector<8x96xf32>
    %203 = arith.addf %199, %202 : vector<8x96xf32>
    %204 = vector.extract_strided_slice %184 {offsets = [16, 0], sizes = [8, 32], strides = [1, 1]} : vector<24x32xf32> to vector<8x32xf32>
    %205 = arith.truncf %204 : vector<8x32xf32> to vector<8x32xbf16>
    %c2_100 = arith.constant 2 : index
    %c0_101 = arith.constant 0 : index
    %c0_102 = arith.constant 0 : index
    %206 = vector.load %arg11[%c2_100, %c0_101, %c0_102] : memref<3x32x96xbf16, #tpu.memory_space<vmem>>, vector<1x32x96xbf16>
    %207 = vector.shape_cast %206 : vector<1x32x96xbf16> to vector<32x96xbf16>
    %cst_103 = arith.constant dense<0.000000e+00> : vector<8x96xf32>
    %208 = tpu.matmul %205, %207, %cst_103 {dimension_numbers = #tpu.dot_dimension_numbers<[1], [0], [0], [1], [0, 0, 1, 1], [], []>} : vector<8x32xbf16>, vector<32x96xbf16>, vector<8x96xf32> -> vector<8x96xf32>
    %c2_104 = arith.constant 2 : index
    %c0_105 = arith.constant 0 : index
    %c0_106 = arith.constant 0 : index
    %209 = vector.load %arg12[%c2_104, %c0_105, %c0_106] : memref<3x1x96xf32, #tpu.memory_space<vmem>>, vector<1x1x96xf32>
    %210 = vector.shape_cast %209 : vector<1x1x96xf32> to vector<1x96xf32>
    %211 = vector.broadcast %210 : vector<1x96xf32> to vector<8x96xf32>
    %212 = arith.addf %208, %211 : vector<8x96xf32>
    %213 = tpu.concatenate %194, %203, %212 in 0 : vector<8x96xf32>, vector<8x96xf32>, vector<8x96xf32> -> vector<24x96xf32>
    %214 = vector.extract_strided_slice %213 {offsets = [0, 0], sizes = [24, 32], strides = [1, 1]} : vector<24x96xf32> to vector<24x32xf32>
    %cst_107 = arith.constant 2.500000e-01 : f32
    %215 = vector.broadcast %cst_107 : f32 to vector<24x32xf32>
    %216 = arith.mulf %214, %215 : vector<24x32xf32>
    %217 = vector.extract_strided_slice %213 {offsets = [0, 32], sizes = [24, 32], strides = [1, 1]} : vector<24x96xf32> to vector<24x32xf32>
    %218 = vector.extract_strided_slice %213 {offsets = [0, 64], sizes = [24, 32], strides = [1, 1]} : vector<24x96xf32> to vector<24x32xf32>
    %219 = vector.extract_strided_slice %216 {offsets = [0, 0], sizes = [24, 16], strides = [1, 1]} : vector<24x32xf32> to vector<24x16xf32>
    %220 = vector.extract_strided_slice %216 {offsets = [0, 16], sizes = [24, 16], strides = [1, 1]} : vector<24x32xf32> to vector<24x16xf32>
    %221 = vector.shape_cast %219 : vector<24x16xf32> to vector<1x24x16xf32>
    %222 = vector.shape_cast %220 : vector<24x16xf32> to vector<1x24x16xf32>
    %223 = tpu.concatenate %221, %222 in 0 : vector<1x24x16xf32>, vector<1x24x16xf32> -> vector<2x24x16xf32>
    %224 = arith.truncf %223 : vector<2x24x16xf32> to vector<2x24x16xbf16>
    %225 = vector.extract_strided_slice %217 {offsets = [0, 0], sizes = [24, 16], strides = [1, 1]} : vector<24x32xf32> to vector<24x16xf32>
    %226 = vector.extract_strided_slice %217 {offsets = [0, 16], sizes = [24, 16], strides = [1, 1]} : vector<24x32xf32> to vector<24x16xf32>
    %227 = vector.shape_cast %225 : vector<24x16xf32> to vector<1x24x16xf32>
    %228 = vector.shape_cast %226 : vector<24x16xf32> to vector<1x24x16xf32>
    %229 = tpu.concatenate %227, %228 in 0 : vector<1x24x16xf32>, vector<1x24x16xf32> -> vector<2x24x16xf32>
    %230 = arith.truncf %229 : vector<2x24x16xf32> to vector<2x24x16xbf16>
    %231 = vector.extract_strided_slice %218 {offsets = [0, 0], sizes = [24, 16], strides = [1, 1]} : vector<24x32xf32> to vector<24x16xf32>
    %232 = vector.extract_strided_slice %218 {offsets = [0, 16], sizes = [24, 16], strides = [1, 1]} : vector<24x32xf32> to vector<24x16xf32>
    %233 = vector.shape_cast %231 : vector<24x16xf32> to vector<1x24x16xf32>
    %234 = vector.shape_cast %232 : vector<24x16xf32> to vector<1x24x16xf32>
    %235 = tpu.concatenate %233, %234 in 0 : vector<1x24x16xf32>, vector<1x24x16xf32> -> vector<2x24x16xf32>
    %236 = arith.truncf %235 : vector<2x24x16xf32> to vector<2x24x16xbf16>
    %cst_108 = arith.constant dense<0.000000e+00> : vector<2x24x24xf32>
    %237 = tpu.matmul %224, %230, %cst_108 {dimension_numbers = #tpu.dot_dimension_numbers<[2], [2], [1], [1], [0, 0, 0, 1, 1, 1], [0], [0]>} : vector<2x24x16xbf16>, vector<2x24x16xbf16>, vector<2x24x24xf32> -> vector<2x24x24xf32>
    %238 = arith.addf %237, %185 : vector<2x24x24xf32>
    %cst_109 = arith.constant dense<0xFF800000> : vector<2x24xf32>
    %239 = vector.multi_reduction <maximumf>, %238, %cst_109 [2] : vector<2x24x24xf32> to vector<2x24xf32>
    %240 = vector.shape_cast %239 : vector<2x24xf32> to vector<2x24x1xf32>
    %241 = vector.broadcast %240 : vector<2x24x1xf32> to vector<2x24x24xf32>
    %242 = arith.subf %238, %241 : vector<2x24x24xf32>
    %243 = math.exp %242 : vector<2x24x24xf32>
    %cst_110 = arith.constant dense<0.000000e+00> : vector<2x24xf32>
    %244 = vector.multi_reduction <add>, %243, %cst_110 [2] : vector<2x24x24xf32> to vector<2x24xf32>
    %245 = vector.shape_cast %244 : vector<2x24xf32> to vector<2x24x1xf32>
    %246 = tpu.reciprocal %245 {approx = true} : vector<2x24x1xf32> -> vector<2x24x1xf32>
    %247 = vector.broadcast %246 : vector<2x24x1xf32> to vector<2x24x24xf32>
    %248 = arith.mulf %243, %247 : vector<2x24x24xf32>
    %249 = arith.truncf %248 : vector<2x24x24xf32> to vector<2x24x24xbf16>
    %cst_111 = arith.constant dense<0.000000e+00> : vector<2x24x16xf32>
    %250 = tpu.matmul %249, %236, %cst_111 {dimension_numbers = #tpu.dot_dimension_numbers<[2], [1], [1], [2], [0, 0, 0, 1, 1, 2], [0], [0]>} : vector<2x24x24xbf16>, vector<2x24x16xbf16>, vector<2x24x16xf32> -> vector<2x24x16xf32>
    %251 = vector.extract_strided_slice %250 {offsets = [0, 0, 0], sizes = [1, 24, 16], strides = [1, 1, 1]} : vector<2x24x16xf32> to vector<1x24x16xf32>
    %252 = vector.shape_cast %251 : vector<1x24x16xf32> to vector<24x16xf32>
    %253 = vector.extract_strided_slice %250 {offsets = [1, 0, 0], sizes = [1, 24, 16], strides = [1, 1, 1]} : vector<2x24x16xf32> to vector<1x24x16xf32>
    %254 = vector.shape_cast %253 : vector<1x24x16xf32> to vector<24x16xf32>
    %255 = tpu.concatenate %252, %254 in 1 : vector<24x16xf32>, vector<24x16xf32> -> vector<24x32xf32>
    %256 = vector.extract_strided_slice %255 {offsets = [0, 0], sizes = [8, 32], strides = [1, 1]} : vector<24x32xf32> to vector<8x32xf32>
    %257 = arith.truncf %256 : vector<8x32xf32> to vector<8x32xbf16>
    %c0_112 = arith.constant 0 : index
    %c0_113 = arith.constant 0 : index
    %c0_114 = arith.constant 0 : index
    %258 = vector.load %arg13[%c0_112, %c0_113, %c0_114] : memref<3x32x32xbf16, #tpu.memory_space<vmem>>, vector<1x32x32xbf16>
    %259 = vector.shape_cast %258 : vector<1x32x32xbf16> to vector<32x32xbf16>
    %cst_115 = arith.constant dense<0.000000e+00> : vector<8x32xf32>
    %260 = tpu.matmul %257, %259, %cst_115 {dimension_numbers = #tpu.dot_dimension_numbers<[1], [0], [0], [1], [0, 0, 1, 1], [], []>} : vector<8x32xbf16>, vector<32x32xbf16>, vector<8x32xf32> -> vector<8x32xf32>
    %c0_116 = arith.constant 0 : index
    %c0_117 = arith.constant 0 : index
    %c0_118 = arith.constant 0 : index
    %261 = vector.load %arg14[%c0_116, %c0_117, %c0_118] : memref<3x1x32xf32, #tpu.memory_space<vmem>>, vector<1x1x32xf32>
    %262 = vector.shape_cast %261 : vector<1x1x32xf32> to vector<1x32xf32>
    %263 = vector.broadcast %262 : vector<1x32xf32> to vector<8x32xf32>
    %264 = arith.addf %260, %263 : vector<8x32xf32>
    %cst_119 = arith.constant dense<0.000000e+00> : vector<8xf32>
    %265 = vector.multi_reduction <add>, %264, %cst_119 [1] : vector<8x32xf32> to vector<8xf32>
    %266 = vector.shape_cast %265 : vector<8xf32> to vector<8x1xf32>
    %cst_120 = arith.constant 3.200000e+01 : f32
    %267 = vector.broadcast %cst_120 : f32 to vector<8x1xf32>
    %268 = arith.divf %266, %267 : vector<8x1xf32>
    %269 = vector.broadcast %268 : vector<8x1xf32> to vector<8x32xf32>
    %270 = arith.subf %264, %269 : vector<8x32xf32>
    %271 = arith.mulf %270, %270 : vector<8x32xf32>
    %cst_121 = arith.constant dense<0.000000e+00> : vector<8xf32>
    %272 = vector.multi_reduction <add>, %271, %cst_121 [1] : vector<8x32xf32> to vector<8xf32>
    %273 = vector.shape_cast %272 : vector<8xf32> to vector<8x1xf32>
    %cst_122 = arith.constant 3.200000e+01 : f32
    %274 = vector.broadcast %cst_122 : f32 to vector<8x1xf32>
    %275 = arith.divf %273, %274 : vector<8x1xf32>
    %276 = vector.broadcast %268 : vector<8x1xf32> to vector<8x32xf32>
    %277 = arith.subf %264, %276 : vector<8x32xf32>
    %cst_123 = arith.constant 9.99999974E-6 : f32
    %278 = vector.broadcast %cst_123 : f32 to vector<8x1xf32>
    %279 = arith.addf %275, %278 : vector<8x1xf32>
    %280 = math.rsqrt %279 : vector<8x1xf32>
    %281 = vector.broadcast %280 : vector<8x1xf32> to vector<8x32xf32>
    %282 = arith.mulf %277, %281 : vector<8x32xf32>
    %c0_124 = arith.constant 0 : index
    %c0_125 = arith.constant 0 : index
    %c0_126 = arith.constant 0 : index
    %283 = vector.load %arg15[%c0_124, %c0_125, %c0_126] : memref<3x1x32xf32, #tpu.memory_space<vmem>>, vector<1x1x32xf32>
    %284 = vector.shape_cast %283 : vector<1x1x32xf32> to vector<1x32xf32>
    %285 = vector.broadcast %284 : vector<1x32xf32> to vector<8x32xf32>
    %286 = arith.mulf %282, %285 : vector<8x32xf32>
    %c0_127 = arith.constant 0 : index
    %c0_128 = arith.constant 0 : index
    %c0_129 = arith.constant 0 : index
    %287 = vector.load %arg16[%c0_127, %c0_128, %c0_129] : memref<3x1x32xf32, #tpu.memory_space<vmem>>, vector<1x1x32xf32>
    %288 = vector.shape_cast %287 : vector<1x1x32xf32> to vector<1x32xf32>
    %289 = vector.broadcast %288 : vector<1x32xf32> to vector<8x32xf32>
    %290 = arith.addf %286, %289 : vector<8x32xf32>
    %291 = vector.extract_strided_slice %184 {offsets = [0, 0], sizes = [8, 32], strides = [1, 1]} : vector<24x32xf32> to vector<8x32xf32>
    %292 = arith.addf %290, %291 : vector<8x32xf32>
    %293 = vector.extract_strided_slice %255 {offsets = [8, 0], sizes = [8, 32], strides = [1, 1]} : vector<24x32xf32> to vector<8x32xf32>
    %294 = arith.truncf %293 : vector<8x32xf32> to vector<8x32xbf16>
    %c1_130 = arith.constant 1 : index
    %c0_131 = arith.constant 0 : index
    %c0_132 = arith.constant 0 : index
    %295 = vector.load %arg13[%c1_130, %c0_131, %c0_132] : memref<3x32x32xbf16, #tpu.memory_space<vmem>>, vector<1x32x32xbf16>
    %296 = vector.shape_cast %295 : vector<1x32x32xbf16> to vector<32x32xbf16>
    %cst_133 = arith.constant dense<0.000000e+00> : vector<8x32xf32>
    %297 = tpu.matmul %294, %296, %cst_133 {dimension_numbers = #tpu.dot_dimension_numbers<[1], [0], [0], [1], [0, 0, 1, 1], [], []>} : vector<8x32xbf16>, vector<32x32xbf16>, vector<8x32xf32> -> vector<8x32xf32>
    %c1_134 = arith.constant 1 : index
    %c0_135 = arith.constant 0 : index
    %c0_136 = arith.constant 0 : index
    %298 = vector.load %arg14[%c1_134, %c0_135, %c0_136] : memref<3x1x32xf32, #tpu.memory_space<vmem>>, vector<1x1x32xf32>
    %299 = vector.shape_cast %298 : vector<1x1x32xf32> to vector<1x32xf32>
    %300 = vector.broadcast %299 : vector<1x32xf32> to vector<8x32xf32>
    %301 = arith.addf %297, %300 : vector<8x32xf32>
    %cst_137 = arith.constant dense<0.000000e+00> : vector<8xf32>
    %302 = vector.multi_reduction <add>, %301, %cst_137 [1] : vector<8x32xf32> to vector<8xf32>
    %303 = vector.shape_cast %302 : vector<8xf32> to vector<8x1xf32>
    %cst_138 = arith.constant 3.200000e+01 : f32
    %304 = vector.broadcast %cst_138 : f32 to vector<8x1xf32>
    %305 = arith.divf %303, %304 : vector<8x1xf32>
    %306 = vector.broadcast %305 : vector<8x1xf32> to vector<8x32xf32>
    %307 = arith.subf %301, %306 : vector<8x32xf32>
    %308 = arith.mulf %307, %307 : vector<8x32xf32>
    %cst_139 = arith.constant dense<0.000000e+00> : vector<8xf32>
    %309 = vector.multi_reduction <add>, %308, %cst_139 [1] : vector<8x32xf32> to vector<8xf32>
    %310 = vector.shape_cast %309 : vector<8xf32> to vector<8x1xf32>
    %cst_140 = arith.constant 3.200000e+01 : f32
    %311 = vector.broadcast %cst_140 : f32 to vector<8x1xf32>
    %312 = arith.divf %310, %311 : vector<8x1xf32>
    %313 = vector.broadcast %305 : vector<8x1xf32> to vector<8x32xf32>
    %314 = arith.subf %301, %313 : vector<8x32xf32>
    %cst_141 = arith.constant 9.99999974E-6 : f32
    %315 = vector.broadcast %cst_141 : f32 to vector<8x1xf32>
    %316 = arith.addf %312, %315 : vector<8x1xf32>
    %317 = math.rsqrt %316 : vector<8x1xf32>
    %318 = vector.broadcast %317 : vector<8x1xf32> to vector<8x32xf32>
    %319 = arith.mulf %314, %318 : vector<8x32xf32>
    %c1_142 = arith.constant 1 : index
    %c0_143 = arith.constant 0 : index
    %c0_144 = arith.constant 0 : index
    %320 = vector.load %arg15[%c1_142, %c0_143, %c0_144] : memref<3x1x32xf32, #tpu.memory_space<vmem>>, vector<1x1x32xf32>
    %321 = vector.shape_cast %320 : vector<1x1x32xf32> to vector<1x32xf32>
    %322 = vector.broadcast %321 : vector<1x32xf32> to vector<8x32xf32>
    %323 = arith.mulf %319, %322 : vector<8x32xf32>
    %c1_145 = arith.constant 1 : index
    %c0_146 = arith.constant 0 : index
    %c0_147 = arith.constant 0 : index
    %324 = vector.load %arg16[%c1_145, %c0_146, %c0_147] : memref<3x1x32xf32, #tpu.memory_space<vmem>>, vector<1x1x32xf32>
    %325 = vector.shape_cast %324 : vector<1x1x32xf32> to vector<1x32xf32>
    %326 = vector.broadcast %325 : vector<1x32xf32> to vector<8x32xf32>
    %327 = arith.addf %323, %326 : vector<8x32xf32>
    %328 = vector.extract_strided_slice %184 {offsets = [8, 0], sizes = [8, 32], strides = [1, 1]} : vector<24x32xf32> to vector<8x32xf32>
    %329 = arith.addf %327, %328 : vector<8x32xf32>
    %330 = vector.extract_strided_slice %255 {offsets = [16, 0], sizes = [8, 32], strides = [1, 1]} : vector<24x32xf32> to vector<8x32xf32>
    %331 = arith.truncf %330 : vector<8x32xf32> to vector<8x32xbf16>
    %c2_148 = arith.constant 2 : index
    %c0_149 = arith.constant 0 : index
    %c0_150 = arith.constant 0 : index
    %332 = vector.load %arg13[%c2_148, %c0_149, %c0_150] : memref<3x32x32xbf16, #tpu.memory_space<vmem>>, vector<1x32x32xbf16>
    %333 = vector.shape_cast %332 : vector<1x32x32xbf16> to vector<32x32xbf16>
    %cst_151 = arith.constant dense<0.000000e+00> : vector<8x32xf32>
    %334 = tpu.matmul %331, %333, %cst_151 {dimension_numbers = #tpu.dot_dimension_numbers<[1], [0], [0], [1], [0, 0, 1, 1], [], []>} : vector<8x32xbf16>, vector<32x32xbf16>, vector<8x32xf32> -> vector<8x32xf32>
    %c2_152 = arith.constant 2 : index
    %c0_153 = arith.constant 0 : index
    %c0_154 = arith.constant 0 : index
    %335 = vector.load %arg14[%c2_152, %c0_153, %c0_154] : memref<3x1x32xf32, #tpu.memory_space<vmem>>, vector<1x1x32xf32>
    %336 = vector.shape_cast %335 : vector<1x1x32xf32> to vector<1x32xf32>
    %337 = vector.broadcast %336 : vector<1x32xf32> to vector<8x32xf32>
    %338 = arith.addf %334, %337 : vector<8x32xf32>
    %cst_155 = arith.constant dense<0.000000e+00> : vector<8xf32>
    %339 = vector.multi_reduction <add>, %338, %cst_155 [1] : vector<8x32xf32> to vector<8xf32>
    %340 = vector.shape_cast %339 : vector<8xf32> to vector<8x1xf32>
    %cst_156 = arith.constant 3.200000e+01 : f32
    %341 = vector.broadcast %cst_156 : f32 to vector<8x1xf32>
    %342 = arith.divf %340, %341 : vector<8x1xf32>
    %343 = vector.broadcast %342 : vector<8x1xf32> to vector<8x32xf32>
    %344 = arith.subf %338, %343 : vector<8x32xf32>
    %345 = arith.mulf %344, %344 : vector<8x32xf32>
    %cst_157 = arith.constant dense<0.000000e+00> : vector<8xf32>
    %346 = vector.multi_reduction <add>, %345, %cst_157 [1] : vector<8x32xf32> to vector<8xf32>
    %347 = vector.shape_cast %346 : vector<8xf32> to vector<8x1xf32>
    %cst_158 = arith.constant 3.200000e+01 : f32
    %348 = vector.broadcast %cst_158 : f32 to vector<8x1xf32>
    %349 = arith.divf %347, %348 : vector<8x1xf32>
    %350 = vector.broadcast %342 : vector<8x1xf32> to vector<8x32xf32>
    %351 = arith.subf %338, %350 : vector<8x32xf32>
    %cst_159 = arith.constant 9.99999974E-6 : f32
    %352 = vector.broadcast %cst_159 : f32 to vector<8x1xf32>
    %353 = arith.addf %349, %352 : vector<8x1xf32>
    %354 = math.rsqrt %353 : vector<8x1xf32>
    %355 = vector.broadcast %354 : vector<8x1xf32> to vector<8x32xf32>
    %356 = arith.mulf %351, %355 : vector<8x32xf32>
    %c2_160 = arith.constant 2 : index
    %c0_161 = arith.constant 0 : index
    %c0_162 = arith.constant 0 : index
    %357 = vector.load %arg15[%c2_160, %c0_161, %c0_162] : memref<3x1x32xf32, #tpu.memory_space<vmem>>, vector<1x1x32xf32>
    %358 = vector.shape_cast %357 : vector<1x1x32xf32> to vector<1x32xf32>
    %359 = vector.broadcast %358 : vector<1x32xf32> to vector<8x32xf32>
    %360 = arith.mulf %356, %359 : vector<8x32xf32>
    %c2_163 = arith.constant 2 : index
    %c0_164 = arith.constant 0 : index
    %c0_165 = arith.constant 0 : index
    %361 = vector.load %arg16[%c2_163, %c0_164, %c0_165] : memref<3x1x32xf32, #tpu.memory_space<vmem>>, vector<1x1x32xf32>
    %362 = vector.shape_cast %361 : vector<1x1x32xf32> to vector<1x32xf32>
    %363 = vector.broadcast %362 : vector<1x32xf32> to vector<8x32xf32>
    %364 = arith.addf %360, %363 : vector<8x32xf32>
    %365 = vector.extract_strided_slice %184 {offsets = [16, 0], sizes = [8, 32], strides = [1, 1]} : vector<24x32xf32> to vector<8x32xf32>
    %366 = arith.addf %364, %365 : vector<8x32xf32>
    %367 = tpu.concatenate %292, %329, %366 in 0 : vector<8x32xf32>, vector<8x32xf32>, vector<8x32xf32> -> vector<24x32xf32>
    %c0_166 = arith.constant 0 : index
    %c0_167 = arith.constant 0 : index
    %368 = vector.load %arg17[%c0_166, %c0_167] : memref<24x32xf32, #tpu.memory_space<vmem>>, vector<24x32xf32>
    tpu.vector_store %arg17[%c0_166, %c0_167], %367 {strides = array<i32>} : memref<24x32xf32, #tpu.memory_space<vmem>>, vector<24x32xf32>,
    return
  }
  func.func @transform_0(%arg0: i32) -> (i32, i32) {
    %c0_i32 = arith.constant 0 : i32
    %c0_i32_0 = arith.constant 0 : i32
    %c0_i32_1 = arith.constant 0 : i32
    return %c0_i32, %c0_i32_0 : i32, i32
  }
  func.func @transform_1(%arg0: i32) -> (i32, i32) {
    %c0_i32 = arith.constant 0 : i32
    %c0_i32_0 = arith.constant 0 : i32
    %c0_i32_1 = arith.constant 0 : i32
    return %c0_i32, %c0_i32_0 : i32, i32
  }
  func.func @transform_2(%arg0: i32) -> (i32, i32, i32) {
    %c0_i32 = arith.constant 0 : i32
    %c0_i32_0 = arith.constant 0 : i32
    %c0_i32_1 = arith.constant 0 : i32
    %c0_i32_2 = arith.constant 0 : i32
    return %c0_i32, %c0_i32_0, %c0_i32_1 : i32, i32, i32
  }
  func.func @transform_3(%arg0: i32) -> (i32, i32, i32) {
    %c0_i32 = arith.constant 0 : i32
    %c0_i32_0 = arith.constant 0 : i32
    %c0_i32_1 = arith.constant 0 : i32
    %c0_i32_2 = arith.constant 0 : i32
    return %c0_i32, %c0_i32_0, %c0_i32_1 : i32, i32, i32
  }
  func.func @transform_4(%arg0: i32) -> (i32, i32, i32) {
    %c0_i32 = arith.constant 0 : i32
    %c0_i32_0 = arith.constant 0 : i32
    %c0_i32_1 = arith.constant 0 : i32
    %c0_i32_2 = arith.constant 0 : i32
    return %c0_i32, %c0_i32_0, %c0_i32_1 : i32, i32, i32
  }
  func.func @transform_5(%arg0: i32) -> (i32, i32, i32) {
    %c0_i32 = arith.constant 0 : i32
    %c0_i32_0 = arith.constant 0 : i32
    %c0_i32_1 = arith.constant 0 : i32
    %c0_i32_2 = arith.constant 0 : i32
    return %c0_i32, %c0_i32_0, %c0_i32_1 : i32, i32, i32
  }
  func.func @transform_6(%arg0: i32) -> (i32, i32, i32) {
    %c0_i32 = arith.constant 0 : i32
    %c0_i32_0 = arith.constant 0 : i32
    %c0_i32_1 = arith.constant 0 : i32
    %c0_i32_2 = arith.constant 0 : i32
    return %c0_i32, %c0_i32_0, %c0_i32_1 : i32, i32, i32
  }
  func.func @transform_7(%arg0: i32) -> (i32, i32, i32) {
    %c0_i32 = arith.constant 0 : i32
    %c0_i32_0 = arith.constant 0 : i32
    %c0_i32_1 = arith.constant 0 : i32
    %c0_i32_2 = arith.constant 0 : i32
    return %c0_i32, %c0_i32_0, %c0_i32_1 : i32, i32, i32
  }
  func.func @transform_8(%arg0: i32) -> (i32, i32, i32) {
    %c0_i32 = arith.constant 0 : i32
    %c0_i32_0 = arith.constant 0 : i32
    %c0_i32_1 = arith.constant 0 : i32
    %c0_i32_2 = arith.constant 0 : i32
    return %c0_i32, %c0_i32_0, %c0_i32_1 : i32, i32, i32
  }
  func.func @transform_9(%arg0: i32) -> (i32, i32, i32) {
    %c0_i32 = arith.constant 0 : i32
    %c0_i32_0 = arith.constant 0 : i32
    %c0_i32_1 = arith.constant 0 : i32
    %c0_i32_2 = arith.constant 0 : i32
    return %c0_i32, %c0_i32_0, %c0_i32_1 : i32, i32, i32
  }
  func.func @transform_10(%arg0: i32) -> (i32, i32, i32) {
    %c0_i32 = arith.constant 0 : i32
    %c0_i32_0 = arith.constant 0 : i32
    %c0_i32_1 = arith.constant 0 : i32
    %c0_i32_2 = arith.constant 0 : i32
    return %c0_i32, %c0_i32_0, %c0_i32_1 : i32, i32, i32
  }
  func.func @transform_11(%arg0: i32) -> (i32, i32, i32) {
    %c0_i32 = arith.constant 0 : i32
    %c0_i32_0 = arith.constant 0 : i32
    %c0_i32_1 = arith.constant 0 : i32
    %c0_i32_2 = arith.constant 0 : i32
    return %c0_i32, %c0_i32_0, %c0_i32_1 : i32, i32, i32
  }
  func.func @transform_12(%arg0: i32) -> (i32, i32, i32) {
    %c0_i32 = arith.constant 0 : i32
    %c0_i32_0 = arith.constant 0 : i32
    %c0_i32_1 = arith.constant 0 : i32
    %c0_i32_2 = arith.constant 0 : i32
    return %c0_i32, %c0_i32_0, %c0_i32_1 : i32, i32, i32
  }
  func.func @transform_13(%arg0: i32) -> (i32, i32, i32) {
    %c0_i32 = arith.constant 0 : i32
    %c0_i32_0 = arith.constant 0 : i32
    %c0_i32_1 = arith.constant 0 : i32
    %c0_i32_2 = arith.constant 0 : i32
    return %c0_i32, %c0_i32_0, %c0_i32_1 : i32, i32, i32
  }
  func.func @transform_14(%arg0: i32) -> (i32, i32, i32) {
    %c0_i32 = arith.constant 0 : i32
    %c0_i32_0 = arith.constant 0 : i32
    %c0_i32_1 = arith.constant 0 : i32
    %c0_i32_2 = arith.constant 0 : i32
    return %c0_i32, %c0_i32_0, %c0_i32_1 : i32, i32, i32
  }
  func.func @transform_15(%arg0: i32) -> (i32, i32, i32) {
    %c0_i32 = arith.constant 0 : i32
    %c0_i32_0 = arith.constant 0 : i32
    %c0_i32_1 = arith.constant 0 : i32
    %c0_i32_2 = arith.constant 0 : i32
    return %c0_i32, %c0_i32_0, %c0_i32_1 : i32, i32, i32
  }
  func.func @transform_16(%arg0: i32) -> (i32, i32) {
    %c0_i32 = arith.constant 0 : i32
    %c0_i32_0 = arith.constant 0 : i32
    %c0_i32_1 = arith.constant 0 : i32
    return %c0_i32, %c0_i32_0 : i32, i32
  }
}

</mosaic_0001>

<llo_original>
// kernel: tpu_custom_call.1
$region0: #{tpu_custom_call.1}
  #allocation0 [shape = 'u32[]', space=smem, size = 0x4, offset = 0x4, fixed_abs, tag = 'smem constant byte address 0x4 - core index']
  #allocation1 [shape = 'u32[144,128]{1,0:T(1,128)}', space=vmem, size = 0x12000, scoped, tag = 'internal scratch']
  %s0 = inlined_call_operand.hbm [shape: f32[24,32], index: 0, kind: input, shape index: {}]
  %s1 = inlined_call_operand.hbm [shape: f32[24,32], index: 1, kind: input, shape index: {}]
  %s2 = inlined_call_operand.hbm [shape: f32[2,24,24], index: 2, kind: input, shape index: {}]
  %s3 = inlined_call_operand.hbm [shape: f32[2,24,24], index: 3, kind: input, shape index: {}]
  %s4 = inlined_call_operand.hbm [shape: bf16[3,32,96], index: 4, kind: input, shape index: {}]
  %s5 = inlined_call_operand.vmem [shape: f32[3,1,96], index: 5, kind: input, shape index: {}]
  %s6 = inlined_call_operand.hbm [shape: bf16[3,32,32], index: 6, kind: input, shape index: {}]
  %s7 = inlined_call_operand.vmem [shape: f32[3,1,32], index: 7, kind: input, shape index: {}]
  %s8 = inlined_call_operand.vmem [shape: f32[3,1,32], index: 8, kind: input, shape index: {}]
  %s9 = inlined_call_operand.vmem [shape: f32[3,1,32], index: 9, kind: input, shape index: {}]
  %s10 = inlined_call_operand.hbm [shape: bf16[3,32,96], index: 10, kind: input, shape index: {}]
  %s11 = inlined_call_operand.vmem [shape: f32[3,1,96], index: 11, kind: input, shape index: {}]
  %s12 = inlined_call_operand.hbm [shape: bf16[3,32,32], index: 12, kind: input, shape index: {}]
  %s13 = inlined_call_operand.vmem [shape: f32[3,1,32], index: 13, kind: input, shape index: {}]
  %s14 = inlined_call_operand.vmem [shape: f32[3,1,32], index: 14, kind: input, shape index: {}]
  %s15 = inlined_call_operand.vmem [shape: f32[3,1,32], index: 15, kind: input, shape index: {}]
  %s16 = inlined_call_operand.hbm [shape: f32[24,32], index: 16, kind: output, shape index: {}]
  %s17 = sld [smem:[#allocation0]]
  $region106: #{tpu_custom_call.1} parent=0
    _
  %s19 = ssub.s32 1, %s17
  %s20 = scalar_select 0, %s19, %s17
  $region1: #{tpu_custom_call.1} parent=0
    #allocation2 [shape = 'u8[12288]{0}', space=vmem, size = 0x3000, scoped, tag = 'input window, operand 0, single buffered']
    #allocation3 [shape = 's32[1]{0}', space=sflag, size = 0x4, scoped, tag = 'scoped memory for tpu_custom_call.1']
    #allocation4 [shape = 's32[1]{0}', space=sflag, size = 0x4, scoped, tag = 'scoped memory for tpu_custom_call.1']
    #allocation5 [shape = 'u8[12288]{0}', space=vmem, size = 0x3000, scoped, tag = 'input window, operand 1, single buffered']
    #allocation6 [shape = 's32[1]{0}', space=sflag, size = 0x4, scoped, tag = 'scoped memory for tpu_custom_call.1']
    #allocation7 [shape = 'u8[24576]{0}', space=vmem, size = 0x6000, scoped, tag = 'input window, operand 2, single buffered']
    #allocation8 [shape = 'u8[24576]{0}', space=vmem, size = 0x6000, scoped, tag = 'input window, operand 3, single buffered']
    #allocation9 [shape = 's32[1]{0}', space=sflag, size = 0x4, scoped, tag = 'scoped memory for tpu_custom_call.1']
    #allocation10 [shape = 'u8[24576]{0}', space=vmem, size = 0x6000, scoped, tag = 'input window, operand 4, single buffered']
    #allocation11 [shape = 'u8[24576]{0}', space=vmem, size = 0x6000, scoped, tag = 'input window, operand 6, single buffered']
    #allocation12 [shape = 's32[1]{0}', space=sflag, size = 0x4, scoped, tag = 'scoped memory for tpu_custom_call.1']
    #allocation13 [shape = 'u8[24576]{0}', space=vmem, size = 0x6000, scoped, tag = 'input window, operand 10, single buffered']
    #allocation14 [shape = 'u8[24576]{0}', space=vmem, size = 0x6000, scoped, tag = 'input window, operand 12, single buffered']
    #allocation15 [shape = 's32[1]{0}', space=sflag, size = 0x4, scoped, tag = 'scoped memory for tpu_custom_call.1']
    #allocation16 [shape = 'u8[12288]{0}', space=vmem, size = 0x3000, scoped, tag = 'output window, operand 0, single buffered']
    %21 = vsyncpa [#allocation3], 0
    %22 = vsyncpa [#allocation6], 0
    %23 = vsyncpa [#allocation9], 0
    %24 = vsyncpa [#allocation12], 0
    %25 = vsyncpa [#allocation15], 0
    %26 = vsyncpa [#allocation4], 0
    // Predicated region
    $region2: #{tpu_custom_call.1} parent=1 // pred_check
      _
    $region3: #{tpu_custom_call.1} parent=1 // pred_check_branch
      %28 = sbr.rel (0) target = $region5
    $region4: #{tpu_custom_call.1} parent=1 // pred_region
      %s30 = ssub.s32 384, 384
      %31 = vsyncadd [#allocation3], %s30
      %s32 = sshll.u32 [#allocation2], 4
      %s33 = int_to_ptr.vmem [resolvable:$true] %s32
      %38 = dma.hbm_to_vmem [thread:$0]  %s0, 384, %s33, [#allocation3], 128, 128, 8
    $region5: #{tpu_custom_call.1} parent=1 // pred_fallthru
      _
    // Predicated region
    $region6: #{tpu_custom_call.1} parent=1 // pred_check
      _
    $region7: #{tpu_custom_call.1} parent=1 // pred_check_branch
      %40 = sbr.rel (0) target = $region9
    $region8: #{tpu_custom_call.1} parent=1 // pred_region
      %s42 = ssub.s32 384, 384
      %43 = vsyncadd [#allocation6], %s42
      %s44 = sshll.u32 [#allocation5], 4
      %s45 = int_to_ptr.vmem [resolvable:$true] %s44
      %50 = dma.hbm_to_vmem [thread:$0]  %s1, 384, %s45, [#allocation6], 128, 128, 8
    $region9: #{tpu_custom_call.1} parent=1 // pred_fallthru
      _
    // Predicated region
    $region10: #{tpu_custom_call.1} parent=1 // pred_check
      _
    $region11: #{tpu_custom_call.1} parent=1 // pred_check_branch
      %52 = sbr.rel (0) target = $region13
    $region12: #{tpu_custom_call.1} parent=1 // pred_region
      %s54 = ssub.s32 768, 768
      %55 = vsyncadd [#allocation6], %s54
      %s56 = sshll.u32 [#allocation7], 4
      %s57 = int_to_ptr.vmem [resolvable:$true] %s56
      %62 = dma.hbm_to_vmem [thread:$0]  %s2, 768, %s57, [#allocation6], 128, 128, 8
    $region13: #{tpu_custom_call.1} parent=1 // pred_fallthru
      _
    // Predicated region
    $region14: #{tpu_custom_call.1} parent=1 // pred_check
      _
    $region15: #{tpu_custom_call.1} parent=1 // pred_check_branch
      %64 = sbr.rel (0) target = $region17
    $region16: #{tpu_custom_call.1} parent=1 // pred_region
      %s66 = ssub.s32 768, 768
      %67 = vsyncadd [#allocation9], %s66
      %s68 = sshll.u32 [#allocation8], 4
      %s69 = int_to_ptr.vmem [resolvable:$true] %s68
      %74 = dma.hbm_to_vmem [thread:$0]  %s3, 768, %s69, [#allocation9], 128, 128, 8
    $region17: #{tpu_custom_call.1} parent=1 // pred_fallthru
      _
    // Predicated region
    $region18: #{tpu_custom_call.1} parent=1 // pred_check
      _
    $region19: #{tpu_custom_call.1} parent=1 // pred_check_branch
      %76 = sbr.rel (0) target = $region21
    $region20: #{tpu_custom_call.1} parent=1 // pred_region
      %s78 = ssub.s32 768, 768
      %79 = vsyncadd [#allocation9], %s78
      %s80 = sshll.u32 [#allocation10], 4
      %s81 = int_to_ptr.vmem [resolvable:$true] %s80
      %86 = dma.hbm_to_vmem [thread:$0]  %s4, 768, %s81, [#allocation9], 64, 64, 4
    $region21: #{tpu_custom_call.1} parent=1 // pred_fallthru
      _
    // Predicated region
    $region22: #{tpu_custom_call.1} parent=1 // pred_check
      _
    $region23: #{tpu_custom_call.1} parent=1 // pred_check_branch
      %88 = sbr.rel (0) target = $region25
    $region24: #{tpu_custom_call.1} parent=1 // pred_region
      _
    $region25: #{tpu_custom_call.1} parent=1 // pred_fallthru
      _
    // Predicated region
    $region26: #{tpu_custom_call.1} parent=1 // pred_check
      _
    $region27: #{tpu_custom_call.1} parent=1 // pred_check_branch
      %90 = sbr.rel (0) target = $region29
    $region28: #{tpu_custom_call.1} parent=1 // pred_region
      %s92 = ssub.s32 768, 768
      %93 = vsyncadd [#allocation12], %s92
      %s94 = sshll.u32 [#allocation11], 4
      %s95 = int_to_ptr.vmem [resolvable:$true] %s94
      %100 = dma.hbm_to_vmem [thread:$0]  %s6, 768, %s95, [#allocation12], 64, 64, 4
    $region29: #{tpu_custom_call.1} parent=1 // pred_fallthru
      _
    // Predicated region
    $region30: #{tpu_custom_call.1} parent=1 // pred_check
      _
    $region31: #{tpu_custom_call.1} parent=1 // pred_check_branch
      %102 = sbr.rel (0) target = $region33
    $region32: #{tpu_custom_call.1} parent=1 // pred_region
      _
    $region33: #{tpu_custom_call.1} parent=1 // pred_fallthru
      _
    // Predicated region
    $region34: #{tpu_custom_call.1} parent=1 // pred_check
      _
    $region35: #{tpu_custom_call.1} parent=1 // pred_check_branch
      %104 = sbr.rel (0) target = $region37
    $region36: #{tpu_custom_call.1} parent=1 // pred_region
      _
    $region37: #{tpu_custom_call.1} parent=1 // pred_fallthru
      _
    // Predicated region
    $region38: #{tpu_custom_call.1} parent=1 // pred_check
      _
    $region39: #{tpu_custom_call.1} parent=1 // pred_check_branch
      %106 = sbr.rel (0) target = $region41
    $region40: #{tpu_custom_call.1} parent=1 // pred_region
      _
    $region41: #{tpu_custom_call.1} parent=1 // pred_fallthru
      _
    // Predicated region
    $region42: #{tpu_custom_call.1} parent=1 // pred_check
      _
    $region43: #{tpu_custom_call.1} parent=1 // pred_check_branch
      %108 = sbr.rel (0) target = $region45
    $region44: #{tpu_custom_call.1} parent=1 // pred_region
      %s110 = ssub.s32 768, 768
      %111 = vsyncadd [#allocation12], %s110
      %s112 = sshll.u32 [#allocation13], 4
      %s113 = int_to_ptr.vmem [resolvable:$true] %s112
      %118 = dma.hbm_to_vmem [thread:$0]  %s10, 768, %s113, [#allocation12], 64, 64, 4
    $region45: #{tpu_custom_call.1} parent=1 // pred_fallthru
      _
    // Predicated region
    $region46: #{tpu_custom_call.1} parent=1 // pred_check
      _
    $region47: #{tpu_custom_call.1} parent=1 // pred_check_branch
      %120 = sbr.rel (0) target = $region49
    $region48: #{tpu_custom_call.1} parent=1 // pred_region
      _
    $region49: #{tpu_custom_call.1} parent=1 // pred_fallthru
      _
    // Predicated region
    $region50: #{tpu_custom_call.1} parent=1 // pred_check
      _
    $region51: #{tpu_custom_call.1} parent=1 // pred_check_branch
      %122 = sbr.rel (0) target = $region53
    $region52: #{tpu_custom_call.1} parent=1 // pred_region
      %s124 = ssub.s32 768, 768
      %125 = vsyncadd [#allocation15], %s124
      %s126 = sshll.u32 [#allocation14], 4
      %s127 = int_to_ptr.vmem [resolvable:$true] %s126
      %132 = dma.hbm_to_vmem [thread:$0]  %s12, 768, %s127, [#allocation15], 64, 64, 4
    $region53: #{tpu_custom_call.1} parent=1 // pred_fallthru
      _
    // Predicated region
    $region54: #{tpu_custom_call.1} parent=1 // pred_check
      _
    $region55: #{tpu_custom_call.1} parent=1 // pred_check_branch
      %134 = sbr.rel (0) target = $region57
    $region56: #{tpu_custom_call.1} parent=1 // pred_region
      _
    $region57: #{tpu_custom_call.1} parent=1 // pred_fallthru
      _
    // Predicated region
    $region58: #{tpu_custom_call.1} parent=1 // pred_check
      _
    $region59: #{tpu_custom_call.1} parent=1 // pred_check_branch
      %136 = sbr.rel (0) target = $region61
    $region60: #{tpu_custom_call.1} parent=1 // pred_region
      _
    $region61: #{tpu_custom_call.1} parent=1 // pred_fallthru
      _
    // Predicated region
    $region62: #{tpu_custom_call.1} parent=1 // pred_check
      _
    $region63: #{tpu_custom_call.1} parent=1 // pred_check_branch
      %138 = sbr.rel (0) target = $region65
    $region64: #{tpu_custom_call.1} parent=1 // pred_region
      _
    $region65: #{tpu_custom_call.1} parent=1 // pred_fallthru
      _
    // Predicated region
    $region66: #{tpu_custom_call.1} parent=1 // pred_check
      _
    $region67: #{tpu_custom_call.1} parent=1 // pred_check_branch
      %140 = sbr.rel (0) target = $region69
    $region68: #{tpu_custom_call.1} parent=1 // pred_region
      %141 = dma.done [#allocation3], 384
    $region69: #{tpu_custom_call.1} parent=1 // pred_fallthru
      _
    // Predicated region
    $region70: #{tpu_custom_call.1} parent=1 // pred_check
      _
    $region71: #{tpu_custom_call.1} parent=1 // pred_check_branch
      %143 = sbr.rel (0) target = $region73
    $region72: #{tpu_custom_call.1} parent=1 // pred_region
      %144 = dma.done [#allocation6], 384
    $region73: #{tpu_custom_call.1} parent=1 // pred_fallthru
      _
    // Predicated region
    $region74: #{tpu_custom_call.1} parent=1 // pred_check
      _
    $region75: #{tpu_custom_call.1} parent=1 // pred_check_branch
      %146 = sbr.rel (0) target = $region77
    $region76: #{tpu_custom_call.1} parent=1 // pred_region
      %147 = dma.done [#allocation6], 768
    $region77: #{tpu_custom_call.1} parent=1 // pred_fallthru
      _
    // Predicated region
    $region78: #{tpu_custom_call.1} parent=1 // pred_check
      _
    $region79: #{tpu_custom_call.1} parent=1 // pred_check_branch
      %149 = sbr.rel (0) target = $region81
    $region80: #{tpu_custom_call.1} parent=1 // pred_region
      %150 = dma.done [#allocation9], 768
    $region81: #{tpu_custom_call.1} parent=1 // pred_fallthru
      _
    // Predicated region
    $region82: #{tpu_custom_call.1} parent=1 // pred_check
      _
    $region83: #{tpu_custom_call.1} parent=1 // pred_check_branch
      %152 = sbr.rel (0) target = $region85
    $region84: #{tpu_custom_call.1} parent=1 // pred_region
      %153 = dma.done [#allocation9], 768
    $region85: #{tpu_custom_call.1} parent=1 // pred_fallthru
      _
    // Predicated region
    $region86: #{tpu_custom_call.1} parent=1 // pred_check
      _
    $region87: #{tpu_custom_call.1} parent=1 // pred_check_branch
      %155 = sbr.rel (0) target = $region89
    $region88: #{tpu_custom_call.1} parent=1 // pred_region
      %156 = dma.done [#allocation12], 768
    $region89: #{tpu_custom_call.1} parent=1 // pred_fallthru
      _
    // Predicated region
    $region90: #{tpu_custom_call.1} parent=1 // pred_check
      _
    $region91: #{tpu_custom_call.1} parent=1 // pred_check_branch
      %158 = sbr.rel (0) target = $region93
    $region92: #{tpu_custom_call.1} parent=1 // pred_region
      %159 = dma.done [#allocation12], 768
    $region93: #{tpu_custom_call.1} parent=1 // pred_fallthru
      _
    // Predicated region
    $region94: #{tpu_custom_call.1} parent=1 // pred_check
      _
    $region95: #{tpu_custom_call.1} parent=1 // pred_check_branch
      %161 = sbr.rel (0) target = $region97
    $region96: #{tpu_custom_call.1} parent=1 // pred_region
      %162 = dma.done [#allocation15], 768
    $region97: #{tpu_custom_call.1} parent=1 // pred_fallthru
      _
    %v164 = vld [vmem:[#allocation2] sm:$0xff]
    %v165 = vld [vmem:[#allocation2 + $0x8] sm:$0xff]
    %v166 = vld [vmem:[#allocation2 + $0x10] sm:$0xff]
    %v167 = vld [vmem:[#allocation5] sm:$0xff]
    %v168 = vld [vmem:[#allocation5 + $0x8] sm:$0xff]
    %v169 = vld [vmem:[#allocation5 + $0x10] sm:$0xff]
    %v170 = vld [vmem:[#allocation7] sm:$0xff]
    %v171 = vld [vmem:[#allocation7 + $0x8] sm:$0xff]
    %v172 = vld [vmem:[#allocation7 + $0x10] sm:$0xff]
    %v173 = vld [vmem:[#allocation7 + $0x18] sm:$0xff]
    %v174 = vld [vmem:[#allocation7 + $0x20] sm:$0xff]
    %v175 = vld [vmem:[#allocation7 + $0x28] sm:$0xff]
    %v176 = vpack.c.bf16 %v164, %v164
    %v177 = vld [vmem:[#allocation10] sm:$0xf]
    %v178 = vld [vmem:[#allocation10 + $0x4] sm:$0xf]
    %v179 = vld [vmem:[#allocation10 + $0x8] sm:$0xf]
    %v180 = vld [vmem:[#allocation10 + $0xc] sm:$0xf]
    %v181 = vld [vmem:[%s5] sm:$0x1]
    %v183 = vlaneseq
    %v184 = vshrl.u32 %v183, 7
    %v185 = vsub.s32 0, %v184
    %v186 = vrot.slane %v181, %v185
    %v192 = vunpack.c.l.b16 %v177
    %v193 = vunpack.c.l.b16 %v178
    %v194 = vunpack.c.l.b16 %v179
    %v195 = vunpack.c.l.b16 %v180
    %v196 = vpack.c.b16 %v193, %v192
    %v197 = vpack.c.b16 %v195, %v194
    %vm200 = vcmask 261120
    %v202 = vsel %vm200, %v176, 0
    %204 = vmatprep.subr.bf16.mxu0 0
    %205 = vmatpush1.bf16.msra.mxu0 %v196
    %206 = vmatprep.subr.bf16.mxu0 0
    %207 = vmatpush1.bf16.msra.mxu0 %v197
    %208 = vmatprep.subr.bf16.mxu0 0
    %209 = vmatpush1.bf16.msra.mxu0 0
    %210 = vmatprep.subr.bf16.mxu0 0
    %211 = vmatpush1.bf16.msra.mxu0 0
    %212 = vmatprep.subr.bf16.mxu0 0
    %213 = vmatpush1.bf16.msra.mxu0 0
    %214 = vmatprep.subr.bf16.mxu0 0
    %215 = vmatpush1.bf16.msra.mxu0 0
    %216 = vmatprep.subr.bf16.mxu0 0
    %217 = vmatpush1.bf16.msra.mxu0 0
    %218 = vmatprep.subr.bf16.mxu0 0
    %219 = vmatpush1.bf16.msra.mxu0 0
    %220 = vmatprep.subr.bf16.mxu0 0
    %221 = vmatpush1.bf16.msra.mxu0 0
    %222 = vmatprep.subr.bf16.mxu0 0
    %223 = vmatpush1.bf16.msra.mxu0 0
    %224 = vmatprep.subr.bf16.mxu0 0
    %225 = vmatpush1.bf16.msra.mxu0 0
    %226 = vmatprep.subr.bf16.mxu0 0
    %227 = vmatpush1.bf16.msra.mxu0 0
    %228 = vmatprep.subr.bf16.mxu0 0
    %229 = vmatpush1.bf16.msra.mxu0 0
    %230 = vmatprep.subr.bf16.mxu0 0
    %231 = vmatpush1.bf16.msra.mxu0 0
    %232 = vmatprep.subr.bf16.mxu0 0
    %233 = vmatpush1.bf16.msra.mxu0 0
    %234 = vmatprep.subr.bf16.mxu0 0
    %235 = vmatpush1.bf16.msra.mxu0 0
    %236 = vmatprep.mubr.bf16.mxu0 0
    %237 = vmatmul.mubr.bf16.gmra.mrb[0].mxu0 %v202
    %v238 = vpop.f32.mrb[0].mxu0
    %v239 = vadd.f32 %v186, %v238
    %v240 = vpop.f32.mrb[0].mxu0
    %v241 = vpop.f32.mrb[0].mxu0
    %v242 = vpop.f32.mrb[0].mxu0
    %243 = vdwg.mxu0
    %v244 = vpack.c.bf16 %v165, %v165
    %s245 = scalar_lea.vmem [#allocation10], 16
    %v246 = vld [vmem:[%s245] sm:$0xf]
    %v247 = vld [vmem:[%s245 + $0x4] sm:$0xf]
    %v248 = vld [vmem:[%s245 + $0x8] sm:$0xf]
    %v249 = vld [vmem:[%s245 + $0xc] sm:$0xf]
    %s250 = scalar_lea.vmem %s5, 1
    %v251 = vld [vmem:[%s250] sm:$0x1]
    %v253 = vlaneseq
    %v254 = vshrl.u32 %v253, 7
    %v255 = vsub.s32 0, %v254
    %v256 = vrot.slane %v251, %v255
    %v262 = vunpack.c.l.b16 %v246
    %v263 = vunpack.c.l.b16 %v247
    %v264 = vunpack.c.l.b16 %v248
    %v265 = vunpack.c.l.b16 %v249
    %v266 = vpack.c.b16 %v263, %v262
    %v267 = vpack.c.b16 %v265, %v264
    %v271 = vsel %vm200, %v244, 0
    %273 = vmatprep.subr.bf16.mxu0 0
    %274 = vmatpush1.bf16.msra.mxu0 %v266
    %275 = vmatprep.subr.bf16.mxu0 0
    %276 = vmatpush1.bf16.msra.mxu0 %v267
    %277 = vmatprep.subr.bf16.mxu0 0
    %278 = vmatpush1.bf16.msra.mxu0 0
    %279 = vmatprep.subr.bf16.mxu0 0
    %280 = vmatpush1.bf16.msra.mxu0 0
    %281 = vmatprep.subr.bf16.mxu0 0
    %282 = vmatpush1.bf16.msra.mxu0 0
    %283 = vmatprep.subr.bf16.mxu0 0
    %284 = vmatpush1.bf16.msra.mxu0 0
    %285 = vmatprep.subr.bf16.mxu0 0
    %286 = vmatpush1.bf16.msra.mxu0 0
    %287 = vmatprep.subr.bf16.mxu0 0
    %288 = vmatpush1.bf16.msra.mxu0 0
    %289 = vmatprep.subr.bf16.mxu0 0
    %290 = vmatpush1.bf16.msra.mxu0 0
    %291 = vmatprep.subr.bf16.mxu0 0
    %292 = vmatpush1.bf16.msra.mxu0 0
    %293 = vmatprep.subr.bf16.mxu0 0
    %294 = vmatpush1.bf16.msra.mxu0 0
    %295 = vmatprep.subr.bf16.mxu0 0
    %296 = vmatpush1.bf16.msra.mxu0 0
    %297 = vmatprep.subr.bf16.mxu0 0
    %298 = vmatpush1.bf16.msra.mxu0 0
    %299 = vmatprep.subr.bf16.mxu0 0
    %300 = vmatpush1.bf16.msra.mxu0 0
    %301 = vmatprep.subr.bf16.mxu0 0
    %302 = vmatpush1.bf16.msra.mxu0 0
    %303 = vmatprep.subr.bf16.mxu0 0
    %304 = vmatpush1.bf16.msra.mxu0 0
    %305 = vmatprep.mubr.bf16.mxu0 0
    %306 = vmatmul.mubr.bf16.gmra.mrb[0].mxu0 %v271
    %v307 = vpop.f32.mrb[0].mxu0
    %v308 = vadd.f32 %v256, %v307
    %v309 = vpop.f32.mrb[0].mxu0
    %v310 = vpop.f32.mrb[0].mxu0
    %v311 = vpop.f32.mrb[0].mxu0
    %312 = vdwg.mxu0
    %v313 = vpack.c.bf16 %v166, %v166
    %s314 = scalar_lea.vmem [#allocation10], 32
    %v315 = vld [vmem:[%s314] sm:$0xf]
    %v316 = vld [vmem:[%s314 + $0x4] sm:$0xf]
    %v317 = vld [vmem:[%s314 + $0x8] sm:$0xf]
    %v318 = vld [vmem:[%s314 + $0xc] sm:$0xf]
    %s319 = scalar_lea.vmem %s5, 2
    %v320 = vld [vmem:[%s319] sm:$0x1]
    %v322 = vlaneseq
    %v323 = vshrl.u32 %v322, 7
    %v324 = vsub.s32 0, %v323
    %v325 = vrot.slane %v320, %v324
    %v331 = vunpack.c.l.b16 %v315
    %v332 = vunpack.c.l.b16 %v316
    %v333 = vunpack.c.l.b16 %v317
    %v334 = vunpack.c.l.b16 %v318
    %v335 = vpack.c.b16 %v332, %v331
    %v336 = vpack.c.b16 %v334, %v333
    %v340 = vsel %vm200, %v313, 0
    %342 = vmatprep.subr.bf16.mxu0 0
    %343 = vmatpush1.bf16.msra.mxu0 %v335
    %344 = vmatprep.subr.bf16.mxu0 0
    %345 = vmatpush1.bf16.msra.mxu0 %v336
    %346 = vmatprep.subr.bf16.mxu0 0
    %347 = vmatpush1.bf16.msra.mxu0 0
    %348 = vmatprep.subr.bf16.mxu0 0
    %349 = vmatpush1.bf16.msra.mxu0 0
    %350 = vmatprep.subr.bf16.mxu0 0
    %351 = vmatpush1.bf16.msra.mxu0 0
    %352 = vmatprep.subr.bf16.mxu0 0
    %353 = vmatpush1.bf16.msra.mxu0 0
    %354 = vmatprep.subr.bf16.mxu0 0
    %355 = vmatpush1.bf16.msra.mxu0 0
    %356 = vmatprep.subr.bf16.mxu0 0
    %357 = vmatpush1.bf16.msra.mxu0 0
    %358 = vmatprep.subr.bf16.mxu0 0
    %359 = vmatpush1.bf16.msra.mxu0 0
    %360 = vmatprep.subr.bf16.mxu0 0
    %361 = vmatpush1.bf16.msra.mxu0 0
    %362 = vmatprep.subr.bf16.mxu0 0
    %363 = vmatpush1.bf16.msra.mxu0 0
    %364 = vmatprep.subr.bf16.mxu0 0
    %365 = vmatpush1.bf16.msra.mxu0 0
    %366 = vmatprep.subr.bf16.mxu0 0
    %367 = vmatpush1.bf16.msra.mxu0 0
    %368 = vmatprep.subr.bf16.mxu0 0
    %369 = vmatpush1.bf16.msra.mxu0 0
    %370 = vmatprep.subr.bf16.mxu0 0
    %371 = vmatpush1.bf16.msra.mxu0 0
    %372 = vmatprep.subr.bf16.mxu0 0
    %373 = vmatpush1.bf16.msra.mxu0 0
    %374 = vmatprep.mubr.bf16.mxu0 0
    %375 = vmatmul.mubr.bf16.gmra.mrb[0].mxu0 %v340
    %v376 = vpop.f32.mrb[0].mxu0
    %v377 = vadd.f32 %v325, %v376
    %v378 = vpop.f32.mrb[0].mxu0
    %v379 = vpop.f32.mrb[0].mxu0
    %v380 = vpop.f32.mrb[0].mxu0
    %381 = vdwg.mxu0
    %v382 = vmul.f32 %v239, 0.25
    %v383 = vmul.f32 %v308, 0.25
    %v384 = vmul.f32 %v377, 0.25
    %388 = vrot.lane.b32.xlu0 %v382, 112
    %v389 = vpop.permute.xlu0 %388
    %390 = vrot.lane.b32.xlu0 %v383, 112
    %v391 = vpop.permute.xlu0 %390
    %392 = vrot.lane.b32.xlu0 %v384, 112
    %v393 = vpop.permute.xlu0 %392
    %v397 = vpack.c.bf16 %v383, %v382
    %v398 = vpack.c.bf16 %v384, %v384
    %v399 = vpack.c.bf16 %v391, %v389
    %v400 = vpack.c.bf16 %v393, %v393
    %404 = vrot.lane.b32.xlu0 %v239, 112
    %v405 = vpop.permute.xlu0 %404
    %406 = vrot.lane.b32.xlu0 %v308, 112
    %v407 = vpop.permute.xlu0 %406
    %408 = vrot.lane.b32.xlu0 %v377, 112
    %v409 = vpop.permute.xlu0 %408
    %v413 = vpack.c.bf16 %v308, %v239
    %v414 = vpack.c.bf16 %v377, %v377
    %v415 = vpack.c.bf16 %v407, %v405
    %v416 = vpack.c.bf16 %v409, %v409
    %419 = vrot.lane.b32.xlu0 %v413, 96
    %v420 = vpop.permute.xlu0 %419
    %421 = vrot.lane.b32.xlu0 %v414, 96
    %v422 = vpop.permute.xlu0 %421
    %vm423 = vcmask 130048
    %v425 = vsel %vm423, %v397, 0
    %v428 = vsel %vm423, %v398, 0
    %v431 = vsel %vm423, %v420, 0
    %v434 = vsel %vm423, %v422, 0
    %436 = vmatprep.subr.bf16.mxu0 0
    %437 = vmatpush1.bf16.xpose.msra.mxu0 %v431
    %438 = vmatprep.subr.bf16.mxu0 0
    %439 = vmatpush1.bf16.xpose.msra.mxu0 %v434
    %440 = vmatprep.subr.bf16.mxu0 0
    %441 = vmatpush1.bf16.xpose.msra.mxu0 0
    %442 = vmatprep.subr.bf16.mxu0 0
    %443 = vmatpush1.bf16.xpose.msra.mxu0 0
    %444 = vmatprep.subr.bf16.mxu0 0
    %445 = vmatpush1.bf16.xpose.msra.mxu0 0
    %446 = vmatprep.subr.bf16.mxu0 0
    %447 = vmatpush1.bf16.xpose.msra.mxu0 0
    %448 = vmatprep.subr.bf16.mxu0 0
    %449 = vmatpush1.bf16.xpose.msra.mxu0 0
    %450 = vmatprep.subr.bf16.mxu0 0
    %451 = vmatpush1.bf16.xpose.msra.mxu0 0
    %452 = vmatprep.subr.bf16.mxu0 0
    %453 = vmatpush1.bf16.xpose.msra.mxu0 0
    %454 = vmatprep.subr.bf16.mxu0 0
    %455 = vmatpush1.bf16.xpose.msra.mxu0 0
    %456 = vmatprep.subr.bf16.mxu0 0
    %457 = vmatpush1.bf16.xpose.msra.mxu0 0
    %458 = vmatprep.subr.bf16.mxu0 0
    %459 = vmatpush1.bf16.xpose.msra.mxu0 0
    %460 = vmatprep.subr.bf16.mxu0 0
    %461 = vmatpush1.bf16.xpose.msra.mxu0 0
    %462 = vmatprep.subr.bf16.mxu0 0
    %463 = vmatpush1.bf16.xpose.msra.mxu0 0
    %464 = vmatprep.subr.bf16.mxu0 0
    %465 = vmatpush1.bf16.xpose.msra.mxu0 0
    %466 = vmatprep.subr.bf16.mxu0 0
    %467 = vmatpush1.bf16.xpose.msra.mxu0 0
    %468 = vmatprep.mubr.bf16.mxu0 0
    %469 = vmatmul.mubr.bf16.gmra.mrb[0].mxu0 %v425
    %v470 = vpop.f32.mrb[0].mxu0
    %v471 = vadd.f32 %v170, %v470
    %v472 = vpop.f32.mrb[0].mxu0
    %v473 = vpop.f32.mrb[0].mxu0
    %v474 = vadd.f32 %v171, %v473
    %v475 = vpop.f32.mrb[0].mxu0
    %476 = vmatprep.mubr.bf16.mxu0 0
    %477 = vmatmul.mubr.bf16.gmra.mrb[0].mxu0 %v428
    %v478 = vpop.f32.mrb[0].mxu0
    %v479 = vadd.f32 %v172, %v478
    %v480 = vpop.f32.mrb[0].mxu0
    %v481 = vpop.f32.mrb[0].mxu0
    %v482 = vpop.f32.mrb[0].mxu0
    %483 = vdwg.mxu0
    %486 = vrot.lane.b32.xlu0 %v415, 96
    %v487 = vpop.permute.xlu0 %486
    %488 = vrot.lane.b32.xlu0 %v416, 96
    %v489 = vpop.permute.xlu0 %488
    %v491 = vsel %vm423, %v399, 0
    %v494 = vsel %vm423, %v400, 0
    %v497 = vsel %vm423, %v487, 0
    %v500 = vsel %vm423, %v489, 0
    %502 = vmatprep.subr.bf16.mxu0 0
    %503 = vmatpush1.bf16.xpose.msra.mxu0 %v497
    %504 = vmatprep.subr.bf16.mxu0 0
    %505 = vmatpush1.bf16.xpose.msra.mxu0 %v500
    %506 = vmatprep.subr.bf16.mxu0 0
    %507 = vmatpush1.bf16.xpose.msra.mxu0 0
    %508 = vmatprep.subr.bf16.mxu0 0
    %509 = vmatpush1.bf16.xpose.msra.mxu0 0
    %510 = vmatprep.subr.bf16.mxu0 0
    %511 = vmatpush1.bf16.xpose.msra.mxu0 0
    %512 = vmatprep.subr.bf16.mxu0 0
    %513 = vmatpush1.bf16.xpose.msra.mxu0 0
    %514 = vmatprep.subr.bf16.mxu0 0
    %515 = vmatpush1.bf16.xpose.msra.mxu0 0
    %516 = vmatprep.subr.bf16.mxu0 0
    %517 = vmatpush1.bf16.xpose.msra.mxu0 0
    %518 = vmatprep.subr.bf16.mxu0 0
    %519 = vmatpush1.bf16.xpose.msra.mxu0 0
    %520 = vmatprep.subr.bf16.mxu0 0
    %521 = vmatpush1.bf16.xpose.msra.mxu0 0
    %522 = vmatprep.subr.bf16.mxu0 0
    %523 = vmatpush1.bf16.xpose.msra.mxu0 0
    %524 = vmatprep.subr.bf16.mxu0 0
    %525 = vmatpush1.bf16.xpose.msra.mxu0 0
    %526 = vmatprep.subr.bf16.mxu0 0
    %527 = vmatpush1.bf16.xpose.msra.mxu0 0
    %528 = vmatprep.subr.bf16.mxu0 0
    %529 = vmatpush1.bf16.xpose.msra.mxu0 0
    %530 = vmatprep.subr.bf16.mxu0 0
    %531 = vmatpush1.bf16.xpose.msra.mxu0 0
    %532 = vmatprep.subr.bf16.mxu0 0
    %533 = vmatpush1.bf16.xpose.msra.mxu0 0
    %534 = vmatprep.mubr.bf16.mxu0 0
    %535 = vmatmul.mubr.bf16.gmra.mrb[0].mxu0 %v491
    %v536 = vpop.f32.mrb[0].mxu0
    %v537 = vadd.f32 %v173, %v536
    %v538 = vpop.f32.mrb[0].mxu0
    %v539 = vpop.f32.mrb[0].mxu0
    %v540 = vadd.f32 %v174, %v539
    %v541 = vpop.f32.mrb[0].mxu0
    %542 = vmatprep.mubr.bf16.mxu0 0
    %543 = vmatmul.mubr.bf16.gmra.mrb[0].mxu0 %v494
    %v544 = vpop.f32.mrb[0].mxu0
    %v545 = vadd.f32 %v175, %v544
    %v546 = vpop.f32.mrb[0].mxu0
    %v547 = vpop.f32.mrb[0].mxu0
    %v548 = vpop.f32.mrb[0].mxu0
    %549 = vdwg.mxu0
    %vm550 = vcmask 195584
    %v551 = vsel %vm550, %v471, -inf
    %552 = vmax.xlane.f32.xlu0 %v551
    %v553 = vpop.xlane.xlu0 %552
    %v554 = vsel %vm550, %v474, -inf
    %555 = vmax.xlane.f32.xlu0 %v554
    %v556 = vpop.xlane.xlu0 %555
    %v557 = vsel %vm550, %v479, -inf
    %558 = vmax.xlane.f32.xlu0 %v557
    %v559 = vpop.xlane.xlu0 %558
    %v560 = vsel %vm550, %v537, -inf
    %561 = vmax.xlane.f32.xlu0 %v560
    %v562 = vpop.xlane.xlu0 %561
    %v563 = vsel %vm550, %v540, -inf
    %564 = vmax.xlane.f32.xlu0 %v563
    %v565 = vpop.xlane.xlu0 %564
    %v566 = vsel %vm550, %v545, -inf
    %567 = vmax.xlane.f32.xlu0 %v566
    %v568 = vpop.xlane.xlu0 %567
    %v569 = vsub.f32 %v471, %v553
    %v570 = vsub.f32 %v474, %v556
    %v571 = vsub.f32 %v479, %v559
    %v572 = vsub.f32 %v537, %v562
    %v573 = vsub.f32 %v540, %v565
    %v574 = vsub.f32 %v545, %v568
    %v575 = vmul.f32 %v569, 1.442695
    %v576 = vpow.pop %v575
    %v577 = vmul.f32 %v570, 1.442695
    %v578 = vpow.pop %v577
    %v579 = vmul.f32 %v571, 1.442695
    %v580 = vpow.pop %v579
    %v581 = vmul.f32 %v572, 1.442695
    %v582 = vpow.pop %v581
    %v583 = vmul.f32 %v573, 1.442695
    %v584 = vpow.pop %v583
    %v585 = vmul.f32 %v574, 1.442695
    %v586 = vpow.pop %v585
    %v587 = vsel %vm550, %v576, 0.0
    %588 = vadd.xlane.f32.xlu0 %v587
    %v589 = vpop.xlane.xlu0 %588
    %v590 = vsel %vm550, %v578, 0.0
    %591 = vadd.xlane.f32.xlu0 %v590
    %v592 = vpop.xlane.xlu0 %591
    %v593 = vsel %vm550, %v580, 0.0
    %594 = vadd.xlane.f32.xlu0 %v593
    %v595 = vpop.xlane.xlu0 %594
    %v596 = vsel %vm550, %v582, 0.0
    %597 = vadd.xlane.f32.xlu0 %v596
    %v598 = vpop.xlane.xlu0 %597
    %v599 = vsel %vm550, %v584, 0.0
    %600 = vadd.xlane.f32.xlu0 %v599
    %v601 = vpop.xlane.xlu0 %600
    %v602 = vsel %vm550, %v586, 0.0
    %603 = vadd.xlane.f32.xlu0 %v602
    %v604 = vpop.xlane.xlu0 %603
    %v605 = vrcp.pop %v589
    %v606 = vrcp.pop %v592
    %v607 = vrcp.pop %v595
    %v608 = vrcp.pop %v598
    %v609 = vrcp.pop %v601
    %v610 = vrcp.pop %v604
    %v611 = vmul.f32 %v576, %v605
    %v612 = vmul.f32 %v578, %v606
    %v613 = vmul.f32 %v580, %v607
    %v614 = vmul.f32 %v582, %v608
    %v615 = vmul.f32 %v584, %v609
    %v616 = vmul.f32 %v586, %v610
    %v617 = vpack.c.bf16 %v612, %v611
    %v618 = vpack.c.bf16 %v613, %v613
    %v619 = vpack.c.bf16 %v615, %v614
    %v620 = vpack.c.bf16 %v616, %v616
    %621 = vrot.lane.b32.xlu0 %v413, 64
    %v622 = vpop.permute.xlu0 %621
    %623 = vrot.lane.b32.xlu0 %v414, 64
    %v624 = vpop.permute.xlu0 %623
    %v627 = vsel %vm550, %v617, 0
    %v630 = vsel %vm550, %v618, 0
    %vm632 = vcmask 1043456
    %v634 = vsel %vm632, %v624, 0
    %636 = vmatprep.subr.bf16.mxu0 0
    %637 = vmatpush1.bf16.msra.mxu0 %v622
    %638 = vmatprep.subr.bf16.mxu0 0
    %639 = vmatpush1.bf16.msra.mxu0 %v634
    %640 = vmatprep.subr.bf16.mxu0 0
    %641 = vmatpush1.bf16.msra.mxu0 0
    %642 = vmatprep.subr.bf16.mxu0 0
    %643 = vmatpush1.bf16.msra.mxu0 0
    %644 = vmatprep.subr.bf16.mxu0 0
    %645 = vmatpush1.bf16.msra.mxu0 0
    %646 = vmatprep.subr.bf16.mxu0 0
    %647 = vmatpush1.bf16.msra.mxu0 0
    %648 = vmatprep.subr.bf16.mxu0 0
    %649 = vmatpush1.bf16.msra.mxu0 0
    %650 = vmatprep.subr.bf16.mxu0 0
    %651 = vmatpush1.bf16.msra.mxu0 0
    %652 = vmatprep.subr.bf16.mxu0 0
    %653 = vmatpush1.bf16.msra.mxu0 0
    %654 = vmatprep.subr.bf16.mxu0 0
    %655 = vmatpush1.bf16.msra.mxu0 0
    %656 = vmatprep.subr.bf16.mxu0 0
    %657 = vmatpush1.bf16.msra.mxu0 0
    %658 = vmatprep.subr.bf16.mxu0 0
    %659 = vmatpush1.bf16.msra.mxu0 0
    %660 = vmatprep.subr.bf16.mxu0 0
    %661 = vmatpush1.bf16.msra.mxu0 0
    %662 = vmatprep.subr.bf16.mxu0 0
    %663 = vmatpush1.bf16.msra.mxu0 0
    %664 = vmatprep.subr.bf16.mxu0 0
    %665 = vmatpush1.bf16.msra.mxu0 0
    %666 = vmatprep.subr.bf16.mxu0 0
    %667 = vmatpush1.bf16.msra.mxu0 0
    %668 = vmatprep.mubr.bf16.mxu0 0
    %669 = vmatmul.mubr.bf16.gmra.mrb[0].mxu0 %v627
    %v670 = vpop.f32.mrb[0].mxu0
    %v671 = vadd.f32 0.0, %v670
    %v672 = vpop.f32.mrb[0].mxu0
    %v673 = vpop.f32.mrb[0].mxu0
    %v674 = vadd.f32 0.0, %v673
    %v675 = vpop.f32.mrb[0].mxu0
    %676 = vmatprep.mubr.bf16.mxu0 0
    %677 = vmatmul.mubr.bf16.gmra.mrb[0].mxu0 %v630
    %v678 = vpop.f32.mrb[0].mxu0
    %v679 = vadd.f32 0.0, %v678
    %v680 = vpop.f32.mrb[0].mxu0
    %v681 = vpop.f32.mrb[0].mxu0
    %v682 = vpop.f32.mrb[0].mxu0
    %683 = vdwg.mxu0
    %684 = vrot.lane.b32.xlu0 %v415, 64
    %v685 = vpop.permute.xlu0 %684
    %686 = vrot.lane.b32.xlu0 %v416, 64
    %v687 = vpop.permute.xlu0 %686
    %v690 = vsel %vm550, %v619, 0
    %v693 = vsel %vm550, %v620, 0
    %v696 = vsel %vm632, %v687, 0
    %698 = vmatprep.subr.bf16.mxu0 0
    %699 = vmatpush1.bf16.msra.mxu0 %v685
    %700 = vmatprep.subr.bf16.mxu0 0
    %701 = vmatpush1.bf16.msra.mxu0 %v696
    %702 = vmatprep.subr.bf16.mxu0 0
    %703 = vmatpush1.bf16.msra.mxu0 0
    %704 = vmatprep.subr.bf16.mxu0 0
    %705 = vmatpush1.bf16.msra.mxu0 0
    %706 = vmatprep.subr.bf16.mxu0 0
    %707 = vmatpush1.bf16.msra.mxu0 0
    %708 = vmatprep.subr.bf16.mxu0 0
    %709 = vmatpush1.bf16.msra.mxu0 0
    %710 = vmatprep.subr.bf16.mxu0 0
    %711 = vmatpush1.bf16.msra.mxu0 0
    %712 = vmatprep.subr.bf16.mxu0 0
    %713 = vmatpush1.bf16.msra.mxu0 0
    %714 = vmatprep.subr.bf16.mxu0 0
    %715 = vmatpush1.bf16.msra.mxu0 0
    %716 = vmatprep.subr.bf16.mxu0 0
    %717 = vmatpush1.bf16.msra.mxu0 0
    %718 = vmatprep.subr.bf16.mxu0 0
    %719 = vmatpush1.bf16.msra.mxu0 0
    %720 = vmatprep.subr.bf16.mxu0 0
    %721 = vmatpush1.bf16.msra.mxu0 0
    %722 = vmatprep.subr.bf16.mxu0 0
    %723 = vmatpush1.bf16.msra.mxu0 0
    %724 = vmatprep.subr.bf16.mxu0 0
    %725 = vmatpush1.bf16.msra.mxu0 0
    %726 = vmatprep.subr.bf16.mxu0 0
    %727 = vmatpush1.bf16.msra.mxu0 0
    %728 = vmatprep.subr.bf16.mxu0 0
    %729 = vmatpush1.bf16.msra.mxu0 0
    %730 = vmatprep.mubr.bf16.mxu0 0
    %731 = vmatmul.mubr.bf16.gmra.mrb[0].mxu0 %v690
    %v732 = vpop.f32.mrb[0].mxu0
    %v733 = vadd.f32 0.0, %v732
    %v734 = vpop.f32.mrb[0].mxu0
    %v735 = vpop.f32.mrb[0].mxu0
    %v736 = vadd.f32 0.0, %v735
    %v737 = vpop.f32.mrb[0].mxu0
    %738 = vmatprep.mubr.bf16.mxu0 0
    %739 = vmatmul.mubr.bf16.gmra.mrb[0].mxu0 %v693
    %v740 = vpop.f32.mrb[0].mxu0
    %v741 = vadd.f32 0.0, %v740
    %v742 = vpop.f32.mrb[0].mxu0
    %v743 = vpop.f32.mrb[0].mxu0
    %v744 = vpop.f32.mrb[0].mxu0
    %745 = vdwg.mxu0
    %749 = vrot.lane.b32.xlu0 %v733, 16
    %v750 = vpop.permute.xlu0 %749
    %751 = vrot.lane.b32.xlu0 %v736, 16
    %v752 = vpop.permute.xlu0 %751
    %753 = vrot.lane.b32.xlu0 %v741, 16
    %v754 = vpop.permute.xlu0 %753
    %v758 = vsel %vm423, %v671, %v750
    %v759 = vsel %vm423, %v674, %v752
    %v760 = vsel %vm423, %v679, %v754
    %v761 = vpack.c.bf16 %v758, %v758
    %v762 = vld [vmem:[#allocation11] sm:$0xf]
    %v763 = vld [vmem:[#allocation11 + $0x4] sm:$0xf]
    %v764 = vld [vmem:[#allocation11 + $0x8] sm:$0xf]
    %v765 = vld [vmem:[#allocation11 + $0xc] sm:$0xf]
    %v766 = vld [vmem:[%s7] sm:$0x1]
    %v768 = vlaneseq
    %v769 = vshrl.u32 %v768, 7
    %v770 = vsub.s32 0, %v769
    %v771 = vrot.slane %v766, %v770
    %v777 = vunpack.c.l.b16 %v762
    %v778 = vunpack.c.l.b16 %v763
    %v779 = vunpack.c.l.b16 %v764
    %v780 = vunpack.c.l.b16 %v765
    %v781 = vpack.c.b16 %v778, %v777
    %v782 = vpack.c.b16 %v780, %v779
    %v786 = vsel %vm200, %v761, 0
    %788 = vmatprep.subr.bf16.mxu0 0
    %789 = vmatpush1.bf16.msra.mxu0 %v781
    %790 = vmatprep.subr.bf16.mxu0 0
    %791 = vmatpush1.bf16.msra.mxu0 %v782
    %792 = vmatprep.subr.bf16.mxu0 0
    %793 = vmatpush1.bf16.msra.mxu0 0
    %794 = vmatprep.subr.bf16.mxu0 0
    %795 = vmatpush1.bf16.msra.mxu0 0
    %796 = vmatprep.subr.bf16.mxu0 0
    %797 = vmatpush1.bf16.msra.mxu0 0
    %798 = vmatprep.subr.bf16.mxu0 0
    %799 = vmatpush1.bf16.msra.mxu0 0
    %800 = vmatprep.subr.bf16.mxu0 0
    %801 = vmatpush1.bf16.msra.mxu0 0
    %802 = vmatprep.subr.bf16.mxu0 0
    %803 = vmatpush1.bf16.msra.mxu0 0
    %804 = vmatprep.subr.bf16.mxu0 0
    %805 = vmatpush1.bf16.msra.mxu0 0
    %806 = vmatprep.subr.bf16.mxu0 0
    %807 = vmatpush1.bf16.msra.mxu0 0
    %808 = vmatprep.subr.bf16.mxu0 0
    %809 = vmatpush1.bf16.msra.mxu0 0
    %810 = vmatprep.subr.bf16.mxu0 0
    %811 = vmatpush1.bf16.msra.mxu0 0
    %812 = vmatprep.subr.bf16.mxu0 0
    %813 = vmatpush1.bf16.msra.mxu0 0
    %814 = vmatprep.subr.bf16.mxu0 0
    %815 = vmatpush1.bf16.msra.mxu0 0
    %816 = vmatprep.subr.bf16.mxu0 0
    %817 = vmatpush1.bf16.msra.mxu0 0
    %818 = vmatprep.subr.bf16.mxu0 0
    %819 = vmatpush1.bf16.msra.mxu0 0
    %820 = vmatprep.mubr.bf16.mxu0 0
    %821 = vmatmul.mubr.bf16.gmra.mrb[0].mxu0 %v786
    %v822 = vpop.f32.mrb[0].mxu0
    %v823 = vadd.f32 %v771, %v822
    %v824 = vpop.f32.mrb[0].mxu0
    %v825 = vpop.f32.mrb[0].mxu0
    %v826 = vpop.f32.mrb[0].mxu0
    %827 = vdwg.mxu0
    %v828 = vsel %vm200, %v823, 0.0
    %829 = vadd.xlane.f32.xlu0 %v828
    %v830 = vpop.xlane.xlu0 %829
    %v831 = vrcp.pop 32.0
    %v832 = vmul.f32 %v830, %v831
    %v833 = vsub.f32 %v823, %v832
    %v834 = vmul.f32 %v833, %v833
    %v835 = vsel %vm200, %v834, 0.0
    %836 = vadd.xlane.f32.xlu0 %v835
    %v837 = vpop.xlane.xlu0 %836
    %v838 = vmul.f32 %v837, %v831
    %v839 = vadd.f32 %v838, 1e-05
    %v840 = vrsqrt.pop %v839
    %v841 = vmul.f32 %v833, %v840
    %v842 = vld [vmem:[%s8] sm:$0x1]
    %v844 = vlaneseq
    %v845 = vshrl.u32 %v844, 7
    %v846 = vsub.s32 0, %v845
    %v847 = vrot.slane %v842, %v846
    %v849 = vmul.f32 %v841, %v847
    %v850 = vld [vmem:[%s9] sm:$0x1]
    %v852 = vlaneseq
    %v853 = vshrl.u32 %v852, 7
    %v854 = vsub.s32 0, %v853
    %v855 = vrot.slane %v850, %v854
    %v857 = vadd.f32 %v849, %v855
    %v858 = vadd.f32 %v857, %v167
    %v859 = vpack.c.bf16 %v759, %v759
    %s860 = scalar_lea.vmem [#allocation11], 16
    %v861 = vld [vmem:[%s860] sm:$0xf]
    %v862 = vld [vmem:[%s860 + $0x4] sm:$0xf]
    %v863 = vld [vmem:[%s860 + $0x8] sm:$0xf]
    %v864 = vld [vmem:[%s860 + $0xc] sm:$0xf]
    %s865 = scalar_lea.vmem %s7, 1
    %v866 = vld [vmem:[%s865] sm:$0x1]
    %v868 = vlaneseq
    %v869 = vshrl.u32 %v868, 7
    %v870 = vsub.s32 0, %v869
    %v871 = vrot.slane %v866, %v870
    %v877 = vunpack.c.l.b16 %v861
    %v878 = vunpack.c.l.b16 %v862
    %v879 = vunpack.c.l.b16 %v863
    %v880 = vunpack.c.l.b16 %v864
    %v881 = vpack.c.b16 %v878, %v877
    %v882 = vpack.c.b16 %v880, %v879
    %v886 = vsel %vm200, %v859, 0
    %888 = vmatprep.subr.bf16.mxu0 0
    %889 = vmatpush1.bf16.msra.mxu0 %v881
    %890 = vmatprep.subr.bf16.mxu0 0
    %891 = vmatpush1.bf16.msra.mxu0 %v882
    %892 = vmatprep.subr.bf16.mxu0 0
    %893 = vmatpush1.bf16.msra.mxu0 0
    %894 = vmatprep.subr.bf16.mxu0 0
    %895 = vmatpush1.bf16.msra.mxu0 0
    %896 = vmatprep.subr.bf16.mxu0 0
    %897 = vmatpush1.bf16.msra.mxu0 0
    %898 = vmatprep.subr.bf16.mxu0 0
    %899 = vmatpush1.bf16.msra.mxu0 0
    %900 = vmatprep.subr.bf16.mxu0 0
    %901 = vmatpush1.bf16.msra.mxu0 0
    %902 = vmatprep.subr.bf16.mxu0 0
    %903 = vmatpush1.bf16.msra.mxu0 0
    %904 = vmatprep.subr.bf16.mxu0 0
    %905 = vmatpush1.bf16.msra.mxu0 0
    %906 = vmatprep.subr.bf16.mxu0 0
    %907 = vmatpush1.bf16.msra.mxu0 0
    %908 = vmatprep.subr.bf16.mxu0 0
    %909 = vmatpush1.bf16.msra.mxu0 0
    %910 = vmatprep.subr.bf16.mxu0 0
    %911 = vmatpush1.bf16.msra.mxu0 0
    %912 = vmatprep.subr.bf16.mxu0 0
    %913 = vmatpush1.bf16.msra.mxu0 0
    %914 = vmatprep.subr.bf16.mxu0 0
    %915 = vmatpush1.bf16.msra.mxu0 0
    %916 = vmatprep.subr.bf16.mxu0 0
    %917 = vmatpush1.bf16.msra.mxu0 0
    %918 = vmatprep.subr.bf16.mxu0 0
    %919 = vmatpush1.bf16.msra.mxu0 0
    %920 = vmatprep.mubr.bf16.mxu0 0
    %921 = vmatmul.mubr.bf16.gmra.mrb[0].mxu0 %v886
    %v922 = vpop.f32.mrb[0].mxu0
    %v923 = vadd.f32 %v871, %v922
    %v924 = vpop.f32.mrb[0].mxu0
    %v925 = vpop.f32.mrb[0].mxu0
    %v926 = vpop.f32.mrb[0].mxu0
    %927 = vdwg.mxu0
    %v928 = vsel %vm200, %v923, 0.0
    %929 = vadd.xlane.f32.xlu0 %v928
    %v930 = vpop.xlane.xlu0 %929
    %v931 = vmul.f32 %v930, %v831
    %v932 = vsub.f32 %v923, %v931
    %v933 = vmul.f32 %v932, %v932
    %v934 = vsel %vm200, %v933, 0.0
    %935 = vadd.xlane.f32.xlu0 %v934
    %v936 = vpop.xlane.xlu0 %935
    %v937 = vmul.f32 %v936, %v831
    %v938 = vadd.f32 %v937, 1e-05
    %v939 = vrsqrt.pop %v938
    %v940 = vmul.f32 %v932, %v939
    %s941 = scalar_lea.vmem %s8, 1
    %v942 = vld [vmem:[%s941] sm:$0x1]
    %v944 = vlaneseq
    %v945 = vshrl.u32 %v944, 7
    %v946 = vsub.s32 0, %v945
    %v947 = vrot.slane %v942, %v946
    %v949 = vmul.f32 %v940, %v947
    %s950 = scalar_lea.vmem %s9, 1
    %v951 = vld [vmem:[%s950] sm:$0x1]
    %v953 = vlaneseq
    %v954 = vshrl.u32 %v953, 7
    %v955 = vsub.s32 0, %v954
    %v956 = vrot.slane %v951, %v955
    %v958 = vadd.f32 %v949, %v956
    %v959 = vadd.f32 %v958, %v168
    %v960 = vpack.c.bf16 %v760, %v760
    %s961 = scalar_lea.vmem [#allocation11], 32
    %v962 = vld [vmem:[%s961] sm:$0xf]
    %v963 = vld [vmem:[%s961 + $0x4] sm:$0xf]
    %v964 = vld [vmem:[%s961 + $0x8] sm:$0xf]
    %v965 = vld [vmem:[%s961 + $0xc] sm:$0xf]
    %s966 = scalar_lea.vmem %s7, 2
    %v967 = vld [vmem:[%s966] sm:$0x1]
    %v969 = vlaneseq
    %v970 = vshrl.u32 %v969, 7
    %v971 = vsub.s32 0, %v970
    %v972 = vrot.slane %v967, %v971
    %v978 = vunpack.c.l.b16 %v962
    %v979 = vunpack.c.l.b16 %v963
    %v980 = vunpack.c.l.b16 %v964
    %v981 = vunpack.c.l.b16 %v965
    %v982 = vpack.c.b16 %v979, %v978
    %v983 = vpack.c.b16 %v981, %v980
    %v987 = vsel %vm200, %v960, 0
    %989 = vmatprep.subr.bf16.mxu0 0
    %990 = vmatpush1.bf16.msra.mxu0 %v982
    %991 = vmatprep.subr.bf16.mxu0 0
    %992 = vmatpush1.bf16.msra.mxu0 %v983
    %993 = vmatprep.subr.bf16.mxu0 0
    %994 = vmatpush1.bf16.msra.mxu0 0
    %995 = vmatprep.subr.bf16.mxu0 0
    %996 = vmatpush1.bf16.msra.mxu0 0
    %997 = vmatprep.subr.bf16.mxu0 0
    %998 = vmatpush1.bf16.msra.mxu0 0
    %999 = vmatprep.subr.bf16.mxu0 0
    %1000 = vmatpush1.bf16.msra.mxu0 0
    %1001 = vmatprep.subr.bf16.mxu0 0
    %1002 = vmatpush1.bf16.msra.mxu0 0
    %1003 = vmatprep.subr.bf16.mxu0 0
    %1004 = vmatpush1.bf16.msra.mxu0 0
    %1005 = vmatprep.subr.bf16.mxu0 0
    %1006 = vmatpush1.bf16.msra.mxu0 0
    %1007 = vmatprep.subr.bf16.mxu0 0
    %1008 = vmatpush1.bf16.msra.mxu0 0
    %1009 = vmatprep.subr.bf16.mxu0 0
    %1010 = vmatpush1.bf16.msra.mxu0 0
    %1011 = vmatprep.subr.bf16.mxu0 0
    %1012 = vmatpush1.bf16.msra.mxu0 0
    %1013 = vmatprep.subr.bf16.mxu0 0
    %1014 = vmatpush1.bf16.msra.mxu0 0
    %1015 = vmatprep.subr.bf16.mxu0 0
    %1016 = vmatpush1.bf16.msra.mxu0 0
    %1017 = vmatprep.subr.bf16.mxu0 0
    %1018 = vmatpush1.bf16.msra.mxu0 0
    %1019 = vmatprep.subr.bf16.mxu0 0
    %1020 = vmatpush1.bf16.msra.mxu0 0
    %1021 = vmatprep.mubr.bf16.mxu0 0
    %1022 = vmatmul.mubr.bf16.gmra.mrb[0].mxu0 %v987
    %v1023 = vpop.f32.mrb[0].mxu0
    %v1024 = vadd.f32 %v972, %v1023
    %v1025 = vpop.f32.mrb[0].mxu0
    %v1026 = vpop.f32.mrb[0].mxu0
    %v1027 = vpop.f32.mrb[0].mxu0
    %1028 = vdwg.mxu0
    %v1029 = vsel %vm200, %v1024, 0.0
    %1030 = vadd.xlane.f32.xlu0 %v1029
    %v1031 = vpop.xlane.xlu0 %1030
    %v1032 = vmul.f32 %v1031, %v831
    %v1033 = vsub.f32 %v1024, %v1032
    %v1034 = vmul.f32 %v1033, %v1033
    %v1035 = vsel %vm200, %v1034, 0.0
    %1036 = vadd.xlane.f32.xlu0 %v1035
    %v1037 = vpop.xlane.xlu0 %1036
    %v1038 = vmul.f32 %v1037, %v831
    %v1039 = vadd.f32 %v1038, 1e-05
    %v1040 = vrsqrt.pop %v1039
    %v1041 = vmul.f32 %v1033, %v1040
    %s1042 = scalar_lea.vmem %s8, 2
    %v1043 = vld [vmem:[%s1042] sm:$0x1]
    %v1045 = vlaneseq
    %v1046 = vshrl.u32 %v1045, 7
    %v1047 = vsub.s32 0, %v1046
    %v1048 = vrot.slane %v1043, %v1047
    %v1050 = vmul.f32 %v1041, %v1048
    %s1051 = scalar_lea.vmem %s9, 2
    %v1052 = vld [vmem:[%s1051] sm:$0x1]
    %v1054 = vlaneseq
    %v1055 = vshrl.u32 %v1054, 7
    %v1056 = vsub.s32 0, %v1055
    %v1057 = vrot.slane %v1052, %v1056
    %v1059 = vadd.f32 %v1050, %v1057
    %v1060 = vadd.f32 %v1059, %v169
    %v1061 = vld [vmem:[#allocation8] sm:$0xff]
    %v1062 = vld [vmem:[#allocation8 + $0x8] sm:$0xff]
    %v1063 = vld [vmem:[#allocation8 + $0x10] sm:$0xff]
    %v1064 = vld [vmem:[#allocation8 + $0x18] sm:$0xff]
    %v1065 = vld [vmem:[#allocation8 + $0x20] sm:$0xff]
    %v1066 = vld [vmem:[#allocation8 + $0x28] sm:$0xff]
    %v1067 = vpack.c.bf16 %v858, %v858
    %v1068 = vld [vmem:[#allocation13] sm:$0xf]
    %v1069 = vld [vmem:[#allocation13 + $0x4] sm:$0xf]
    %v1070 = vld [vmem:[#allocation13 + $0x8] sm:$0xf]
    %v1071 = vld [vmem:[#allocation13 + $0xc] sm:$0xf]
    %v1072 = vld [vmem:[%s11] sm:$0x1]
    %v1074 = vlaneseq
    %v1075 = vshrl.u32 %v1074, 7
    %v1076 = vsub.s32 0, %v1075
    %v1077 = vrot.slane %v1072, %v1076
    %v1083 = vunpack.c.l.b16 %v1068
    %v1084 = vunpack.c.l.b16 %v1069
    %v1085 = vunpack.c.l.b16 %v1070
    %v1086 = vunpack.c.l.b16 %v1071
    %v1087 = vpack.c.b16 %v1084, %v1083
    %v1088 = vpack.c.b16 %v1086, %v1085
    %v1092 = vsel %vm200, %v1067, 0
    %1094 = vmatprep.subr.bf16.mxu0 0
    %1095 = vmatpush1.bf16.msra.mxu0 %v1087
    %1096 = vmatprep.subr.bf16.mxu0 0
    %1097 = vmatpush1.bf16.msra.mxu0 %v1088
    %1098 = vmatprep.subr.bf16.mxu0 0
    %1099 = vmatpush1.bf16.msra.mxu0 0
    %1100 = vmatprep.subr.bf16.mxu0 0
    %1101 = vmatpush1.bf16.msra.mxu0 0
    %1102 = vmatprep.subr.bf16.mxu0 0
    %1103 = vmatpush1.bf16.msra.mxu0 0
    %1104 = vmatprep.subr.bf16.mxu0 0
    %1105 = vmatpush1.bf16.msra.mxu0 0
    %1106 = vmatprep.subr.bf16.mxu0 0
    %1107 = vmatpush1.bf16.msra.mxu0 0
    %1108 = vmatprep.subr.bf16.mxu0 0
    %1109 = vmatpush1.bf16.msra.mxu0 0
    %1110 = vmatprep.subr.bf16.mxu0 0
    %1111 = vmatpush1.bf16.msra.mxu0 0
    %1112 = vmatprep.subr.bf16.mxu0 0
    %1113 = vmatpush1.bf16.msra.mxu0 0
    %1114 = vmatprep.subr.bf16.mxu0 0
    %1115 = vmatpush1.bf16.msra.mxu0 0
    %1116 = vmatprep.subr.bf16.mxu0 0
    %1117 = vmatpush1.bf16.msra.mxu0 0
    %1118 = vmatprep.subr.bf16.mxu0 0
    %1119 = vmatpush1.bf16.msra.mxu0 0
    %1120 = vmatprep.subr.bf16.mxu0 0
    %1121 = vmatpush1.bf16.msra.mxu0 0
    %1122 = vmatprep.subr.bf16.mxu0 0
    %1123 = vmatpush1.bf16.msra.mxu0 0
    %1124 = vmatprep.subr.bf16.mxu0 0
    %1125 = vmatpush1.bf16.msra.mxu0 0
    %1126 = vmatprep.mubr.bf16.mxu0 0
    %1127 = vmatmul.mubr.bf16.gmra.mrb[0].mxu0 %v1092
    %v1128 = vpop.f32.mrb[0].mxu0
    %v1129 = vadd.f32 %v1077, %v1128
    %v1130 = vpop.f32.mrb[0].mxu0
    %v1131 = vpop.f32.mrb[0].mxu0
    %v1132 = vpop.f32.mrb[0].mxu0
    %1133 = vdwg.mxu0
    %v1134 = vpack.c.bf16 %v959, %v959
    %s1135 = scalar_lea.vmem [#allocation13], 16
    %v1136 = vld [vmem:[%s1135] sm:$0xf]
    %v1137 = vld [vmem:[%s1135 + $0x4] sm:$0xf]
    %v1138 = vld [vmem:[%s1135 + $0x8] sm:$0xf]
    %v1139 = vld [vmem:[%s1135 + $0xc] sm:$0xf]
    %s1140 = scalar_lea.vmem %s11, 1
    %v1141 = vld [vmem:[%s1140] sm:$0x1]
    %v1143 = vlaneseq
    %v1144 = vshrl.u32 %v1143, 7
    %v1145 = vsub.s32 0, %v1144
    %v1146 = vrot.slane %v1141, %v1145
    %v1152 = vunpack.c.l.b16 %v1136
    %v1153 = vunpack.c.l.b16 %v1137
    %v1154 = vunpack.c.l.b16 %v1138
    %v1155 = vunpack.c.l.b16 %v1139
    %v1156 = vpack.c.b16 %v1153, %v1152
    %v1157 = vpack.c.b16 %v1155, %v1154
    %v1161 = vsel %vm200, %v1134, 0
    %1163 = vmatprep.subr.bf16.mxu0 0
    %1164 = vmatpush1.bf16.msra.mxu0 %v1156
    %1165 = vmatprep.subr.bf16.mxu0 0
    %1166 = vmatpush1.bf16.msra.mxu0 %v1157
    %1167 = vmatprep.subr.bf16.mxu0 0
    %1168 = vmatpush1.bf16.msra.mxu0 0
    %1169 = vmatprep.subr.bf16.mxu0 0
    %1170 = vmatpush1.bf16.msra.mxu0 0
    %1171 = vmatprep.subr.bf16.mxu0 0
    %1172 = vmatpush1.bf16.msra.mxu0 0
    %1173 = vmatprep.subr.bf16.mxu0 0
    %1174 = vmatpush1.bf16.msra.mxu0 0
    %1175 = vmatprep.subr.bf16.mxu0 0
    %1176 = vmatpush1.bf16.msra.mxu0 0
    %1177 = vmatprep.subr.bf16.mxu0 0
    %1178 = vmatpush1.bf16.msra.mxu0 0
    %1179 = vmatprep.subr.bf16.mxu0 0
    %1180 = vmatpush1.bf16.msra.mxu0 0
    %1181 = vmatprep.subr.bf16.mxu0 0
    %1182 = vmatpush1.bf16.msra.mxu0 0
    %1183 = vmatprep.subr.bf16.mxu0 0
    %1184 = vmatpush1.bf16.msra.mxu0 0
    %1185 = vmatprep.subr.bf16.mxu0 0
    %1186 = vmatpush1.bf16.msra.mxu0 0
    %1187 = vmatprep.subr.bf16.mxu0 0
    %1188 = vmatpush1.bf16.msra.mxu0 0
    %1189 = vmatprep.subr.bf16.mxu0 0
    %1190 = vmatpush1.bf16.msra.mxu0 0
    %1191 = vmatprep.subr.bf16.mxu0 0
    %1192 = vmatpush1.bf16.msra.mxu0 0
    %1193 = vmatprep.subr.bf16.mxu0 0
    %1194 = vmatpush1.bf16.msra.mxu0 0
    %1195 = vmatprep.mubr.bf16.mxu0 0
    %1196 = vmatmul.mubr.bf16.gmra.mrb[0].mxu0 %v1161
    %v1197 = vpop.f32.mrb[0].mxu0
    %v1198 = vadd.f32 %v1146, %v1197
    %v1199 = vpop.f32.mrb[0].mxu0
    %v1200 = vpop.f32.mrb[0].mxu0
    %v1201 = vpop.f32.mrb[0].mxu0
    %1202 = vdwg.mxu0
    %v1203 = vpack.c.bf16 %v1060, %v1060
    %s1204 = scalar_lea.vmem [#allocation13], 32
    %v1205 = vld [vmem:[%s1204] sm:$0xf]
    %v1206 = vld [vmem:[%s1204 + $0x4] sm:$0xf]
    %v1207 = vld [vmem:[%s1204 + $0x8] sm:$0xf]
    %v1208 = vld [vmem:[%s1204 + $0xc] sm:$0xf]
    %s1209 = scalar_lea.vmem %s11, 2
    %v1210 = vld [vmem:[%s1209] sm:$0x1]
    %v1212 = vlaneseq
    %v1213 = vshrl.u32 %v1212, 7
    %v1214 = vsub.s32 0, %v1213
    %v1215 = vrot.slane %v1210, %v1214
    %v1221 = vunpack.c.l.b16 %v1205
    %v1222 = vunpack.c.l.b16 %v1206
    %v1223 = vunpack.c.l.b16 %v1207
    %v1224 = vunpack.c.l.b16 %v1208
    %v1225 = vpack.c.b16 %v1222, %v1221
    %v1226 = vpack.c.b16 %v1224, %v1223
    %v1230 = vsel %vm200, %v1203, 0
    %1232 = vmatprep.subr.bf16.mxu0 0
    %1233 = vmatpush1.bf16.msra.mxu0 %v1225
    %1234 = vmatprep.subr.bf16.mxu0 0
    %1235 = vmatpush1.bf16.msra.mxu0 %v1226
    %1236 = vmatprep.subr.bf16.mxu0 0
    %1237 = vmatpush1.bf16.msra.mxu0 0
    %1238 = vmatprep.subr.bf16.mxu0 0
    %1239 = vmatpush1.bf16.msra.mxu0 0
    %1240 = vmatprep.subr.bf16.mxu0 0
    %1241 = vmatpush1.bf16.msra.mxu0 0
    %1242 = vmatprep.subr.bf16.mxu0 0
    %1243 = vmatpush1.bf16.msra.mxu0 0
    %1244 = vmatprep.subr.bf16.mxu0 0
    %1245 = vmatpush1.bf16.msra.mxu0 0
    %1246 = vmatprep.subr.bf16.mxu0 0
    %1247 = vmatpush1.bf16.msra.mxu0 0
    %1248 = vmatprep.subr.bf16.mxu0 0
    %1249 = vmatpush1.bf16.msra.mxu0 0
    %1250 = vmatprep.subr.bf16.mxu0 0
    %1251 = vmatpush1.bf16.msra.mxu0 0
    %1252 = vmatprep.subr.bf16.mxu0 0
    %1253 = vmatpush1.bf16.msra.mxu0 0
    %1254 = vmatprep.subr.bf16.mxu0 0
    %1255 = vmatpush1.bf16.msra.mxu0 0
    %1256 = vmatprep.subr.bf16.mxu0 0
    %1257 = vmatpush1.bf16.msra.mxu0 0
    %1258 = vmatprep.subr.bf16.mxu0 0
    %1259 = vmatpush1.bf16.msra.mxu0 0
    %1260 = vmatprep.subr.bf16.mxu0 0
    %1261 = vmatpush1.bf16.msra.mxu0 0
    %1262 = vmatprep.subr.bf16.mxu0 0
    %1263 = vmatpush1.bf16.msra.mxu0 0
    %1264 = vmatprep.mubr.bf16.mxu0 0
    %1265 = vmatmul.mubr.bf16.gmra.mrb[0].mxu0 %v1230
    %v1266 = vpop.f32.mrb[0].mxu0
    %v1267 = vadd.f32 %v1215, %v1266
    %v1268 = vpop.f32.mrb[0].mxu0
    %v1269 = vpop.f32.mrb[0].mxu0
    %v1270 = vpop.f32.mrb[0].mxu0
    %1271 = vdwg.mxu0
    %v1272 = vmul.f32 %v1129, 0.25
    %v1273 = vmul.f32 %v1198, 0.25
    %v1274 = vmul.f32 %v1267, 0.25
    %1278 = vrot.lane.b32.xlu0 %v1272, 112
    %v1279 = vpop.permute.xlu0 %1278
    %1280 = vrot.lane.b32.xlu0 %v1273, 112
    %v1281 = vpop.permute.xlu0 %1280
    %1282 = vrot.lane.b32.xlu0 %v1274, 112
    %v1283 = vpop.permute.xlu0 %1282
    %v1287 = vpack.c.bf16 %v1273, %v1272
    %v1288 = vpack.c.bf16 %v1274, %v1274
    %v1289 = vpack.c.bf16 %v1281, %v1279
    %v1290 = vpack.c.bf16 %v1283, %v1283
    %1294 = vrot.lane.b32.xlu0 %v1129, 112
    %v1295 = vpop.permute.xlu0 %1294
    %1296 = vrot.lane.b32.xlu0 %v1198, 112
    %v1297 = vpop.permute.xlu0 %1296
    %1298 = vrot.lane.b32.xlu0 %v1267, 112
    %v1299 = vpop.permute.xlu0 %1298
    %v1303 = vpack.c.bf16 %v1198, %v1129
    %v1304 = vpack.c.bf16 %v1267, %v1267
    %v1305 = vpack.c.bf16 %v1297, %v1295
    %v1306 = vpack.c.bf16 %v1299, %v1299
    %1309 = vrot.lane.b32.xlu0 %v1303, 96
    %v1310 = vpop.permute.xlu0 %1309
    %1311 = vrot.lane.b32.xlu0 %v1304, 96
    %v1312 = vpop.permute.xlu0 %1311
    %v1314 = vsel %vm423, %v1287, 0
    %v1317 = vsel %vm423, %v1288, 0
    %v1320 = vsel %vm423, %v1310, 0
    %v1323 = vsel %vm423, %v1312, 0
    %1325 = vmatprep.subr.bf16.mxu0 0
    %1326 = vmatpush1.bf16.xpose.msra.mxu0 %v1320
    %1327 = vmatprep.subr.bf16.mxu0 0
    %1328 = vmatpush1.bf16.xpose.msra.mxu0 %v1323
    %1329 = vmatprep.subr.bf16.mxu0 0
    %1330 = vmatpush1.bf16.xpose.msra.mxu0 0
    %1331 = vmatprep.subr.bf16.mxu0 0
    %1332 = vmatpush1.bf16.xpose.msra.mxu0 0
    %1333 = vmatprep.subr.bf16.mxu0 0
    %1334 = vmatpush1.bf16.xpose.msra.mxu0 0
    %1335 = vmatprep.subr.bf16.mxu0 0
    %1336 = vmatpush1.bf16.xpose.msra.mxu0 0
    %1337 = vmatprep.subr.bf16.mxu0 0
    %1338 = vmatpush1.bf16.xpose.msra.mxu0 0
    %1339 = vmatprep.subr.bf16.mxu0 0
    %1340 = vmatpush1.bf16.xpose.msra.mxu0 0
    %1341 = vmatprep.subr.bf16.mxu0 0
    %1342 = vmatpush1.bf16.xpose.msra.mxu0 0
    %1343 = vmatprep.subr.bf16.mxu0 0
    %1344 = vmatpush1.bf16.xpose.msra.mxu0 0
    %1345 = vmatprep.subr.bf16.mxu0 0
    %1346 = vmatpush1.bf16.xpose.msra.mxu0 0
    %1347 = vmatprep.subr.bf16.mxu0 0
    %1348 = vmatpush1.bf16.xpose.msra.mxu0 0
    %1349 = vmatprep.subr.bf16.mxu0 0
    %1350 = vmatpush1.bf16.xpose.msra.mxu0 0
    %1351 = vmatprep.subr.bf16.mxu0 0
    %1352 = vmatpush1.bf16.xpose.msra.mxu0 0
    %1353 = vmatprep.subr.bf16.mxu0 0
    %1354 = vmatpush1.bf16.xpose.msra.mxu0 0
    %1355 = vmatprep.subr.bf16.mxu0 0
    %1356 = vmatpush1.bf16.xpose.msra.mxu0 0
    %1357 = vmatprep.mubr.bf16.mxu0 0
    %1358 = vmatmul.mubr.bf16.gmra.mrb[0].mxu0 %v1314
    %v1359 = vpop.f32.mrb[0].mxu0
    %v1360 = vadd.f32 %v1061, %v1359
    %v1361 = vpop.f32.mrb[0].mxu0
    %v1362 = vpop.f32.mrb[0].mxu0
    %v1363 = vadd.f32 %v1062, %v1362
    %v1364 = vpop.f32.mrb[0].mxu0
    %1365 = vmatprep.mubr.bf16.mxu0 0
    %1366 = vmatmul.mubr.bf16.gmra.mrb[0].mxu0 %v1317
    %v1367 = vpop.f32.mrb[0].mxu0
    %v1368 = vadd.f32 %v1063, %v1367
    %v1369 = vpop.f32.mrb[0].mxu0
    %v1370 = vpop.f32.mrb[0].mxu0
    %v1371 = vpop.f32.mrb[0].mxu0
    %1372 = vdwg.mxu0
    %1375 = vrot.lane.b32.xlu0 %v1305, 96
    %v1376 = vpop.permute.xlu0 %1375
    %1377 = vrot.lane.b32.xlu0 %v1306, 96
    %v1378 = vpop.permute.xlu0 %1377
    %v1380 = vsel %vm423, %v1289, 0
    %v1383 = vsel %vm423, %v1290, 0
    %v1386 = vsel %vm423, %v1376, 0
    %v1389 = vsel %vm423, %v1378, 0
    %1391 = vmatprep.subr.bf16.mxu0 0
    %1392 = vmatpush1.bf16.xpose.msra.mxu0 %v1386
    %1393 = vmatprep.subr.bf16.mxu0 0
    %1394 = vmatpush1.bf16.xpose.msra.mxu0 %v1389
    %1395 = vmatprep.subr.bf16.mxu0 0
    %1396 = vmatpush1.bf16.xpose.msra.mxu0 0
    %1397 = vmatprep.subr.bf16.mxu0 0
    %1398 = vmatpush1.bf16.xpose.msra.mxu0 0
    %1399 = vmatprep.subr.bf16.mxu0 0
    %1400 = vmatpush1.bf16.xpose.msra.mxu0 0
    %1401 = vmatprep.subr.bf16.mxu0 0
    %1402 = vmatpush1.bf16.xpose.msra.mxu0 0
    %1403 = vmatprep.subr.bf16.mxu0 0
    %1404 = vmatpush1.bf16.xpose.msra.mxu0 0
    %1405 = vmatprep.subr.bf16.mxu0 0
    %1406 = vmatpush1.bf16.xpose.msra.mxu0 0
    %1407 = vmatprep.subr.bf16.mxu0 0
    %1408 = vmatpush1.bf16.xpose.msra.mxu0 0
    %1409 = vmatprep.subr.bf16.mxu0 0
    %1410 = vmatpush1.bf16.xpose.msra.mxu0 0
    %1411 = vmatprep.subr.bf16.mxu0 0
    %1412 = vmatpush1.bf16.xpose.msra.mxu0 0
    %1413 = vmatprep.subr.bf16.mxu0 0
    %1414 = vmatpush1.bf16.xpose.msra.mxu0 0
    %1415 = vmatprep.subr.bf16.mxu0 0
    %1416 = vmatpush1.bf16.xpose.msra.mxu0 0
    %1417 = vmatprep.subr.bf16.mxu0 0
    %1418 = vmatpush1.bf16.xpose.msra.mxu0 0
    %1419 = vmatprep.subr.bf16.mxu0 0
    %1420 = vmatpush1.bf16.xpose.msra.mxu0 0
    %1421 = vmatprep.subr.bf16.mxu0 0
    %1422 = vmatpush1.bf16.xpose.msra.mxu0 0
    %1423 = vmatprep.mubr.bf16.mxu0 0
    %1424 = vmatmul.mubr.bf16.gmra.mrb[0].mxu0 %v1380
    %v1425 = vpop.f32.mrb[0].mxu0
    %v1426 = vadd.f32 %v1064, %v1425
    %v1427 = vpop.f32.mrb[0].mxu0
    %v1428 = vpop.f32.mrb[0].mxu0
    %v1429 = vadd.f32 %v1065, %v1428
    %v1430 = vpop.f32.mrb[0].mxu0
    %1431 = vmatprep.mubr.bf16.mxu0 0
    %1432 = vmatmul.mubr.bf16.gmra.mrb[0].mxu0 %v1383
    %v1433 = vpop.f32.mrb[0].mxu0
    %v1434 = vadd.f32 %v1066, %v1433
    %v1435 = vpop.f32.mrb[0].mxu0
    %v1436 = vpop.f32.mrb[0].mxu0
    %v1437 = vpop.f32.mrb[0].mxu0
    %1438 = vdwg.mxu0
    %v1439 = vsel %vm550, %v1360, -inf
    %1440 = vmax.xlane.f32.xlu0 %v1439
    %v1441 = vpop.xlane.xlu0 %1440
    %v1442 = vsel %vm550, %v1363, -inf
    %1443 = vmax.xlane.f32.xlu0 %v1442
    %v1444 = vpop.xlane.xlu0 %1443
    %v1445 = vsel %vm550, %v1368, -inf
    %1446 = vmax.xlane.f32.xlu0 %v1445
    %v1447 = vpop.xlane.xlu0 %1446
    %v1448 = vsel %vm550, %v1426, -inf
    %1449 = vmax.xlane.f32.xlu0 %v1448
    %v1450 = vpop.xlane.xlu0 %1449
    %v1451 = vsel %vm550, %v1429, -inf
    %1452 = vmax.xlane.f32.xlu0 %v1451
    %v1453 = vpop.xlane.xlu0 %1452
    %v1454 = vsel %vm550, %v1434, -inf
    %1455 = vmax.xlane.f32.xlu0 %v1454
    %v1456 = vpop.xlane.xlu0 %1455
    %v1457 = vsub.f32 %v1360, %v1441
    %v1458 = vsub.f32 %v1363, %v1444
    %v1459 = vsub.f32 %v1368, %v1447
    %v1460 = vsub.f32 %v1426, %v1450
    %v1461 = vsub.f32 %v1429, %v1453
    %v1462 = vsub.f32 %v1434, %v1456
    %v1463 = vmul.f32 %v1457, 1.442695
    %v1464 = vpow.pop %v1463
    %v1465 = vmul.f32 %v1458, 1.442695
    %v1466 = vpow.pop %v1465
    %v1467 = vmul.f32 %v1459, 1.442695
    %v1468 = vpow.pop %v1467
    %v1469 = vmul.f32 %v1460, 1.442695
    %v1470 = vpow.pop %v1469
    %v1471 = vmul.f32 %v1461, 1.442695
    %v1472 = vpow.pop %v1471
    %v1473 = vmul.f32 %v1462, 1.442695
    %v1474 = vpow.pop %v1473
    %v1475 = vsel %vm550, %v1464, 0.0
    %1476 = vadd.xlane.f32.xlu0 %v1475
    %v1477 = vpop.xlane.xlu0 %1476
    %v1478 = vsel %vm550, %v1466, 0.0
    %1479 = vadd.xlane.f32.xlu0 %v1478
    %v1480 = vpop.xlane.xlu0 %1479
    %v1481 = vsel %vm550, %v1468, 0.0
    %1482 = vadd.xlane.f32.xlu0 %v1481
    %v1483 = vpop.xlane.xlu0 %1482
    %v1484 = vsel %vm550, %v1470, 0.0
    %1485 = vadd.xlane.f32.xlu0 %v1484
    %v1486 = vpop.xlane.xlu0 %1485
    %v1487 = vsel %vm550, %v1472, 0.0
    %1488 = vadd.xlane.f32.xlu0 %v1487
    %v1489 = vpop.xlane.xlu0 %1488
    %v1490 = vsel %vm550, %v1474, 0.0
    %1491 = vadd.xlane.f32.xlu0 %v1490
    %v1492 = vpop.xlane.xlu0 %1491
    %v1493 = vrcp.pop %v1477
    %v1494 = vrcp.pop %v1480
    %v1495 = vrcp.pop %v1483
    %v1496 = vrcp.pop %v1486
    %v1497 = vrcp.pop %v1489
    %v1498 = vrcp.pop %v1492
    %v1499 = vmul.f32 %v1464, %v1493
    %v1500 = vmul.f32 %v1466, %v1494
    %v1501 = vmul.f32 %v1468, %v1495
    %v1502 = vmul.f32 %v1470, %v1496
    %v1503 = vmul.f32 %v1472, %v1497
    %v1504 = vmul.f32 %v1474, %v1498
    %v1505 = vpack.c.bf16 %v1500, %v1499
    %v1506 = vpack.c.bf16 %v1501, %v1501
    %v1507 = vpack.c.bf16 %v1503, %v1502
    %v1508 = vpack.c.bf16 %v1504, %v1504
    %1509 = vrot.lane.b32.xlu0 %v1303, 64
    %v1510 = vpop.permute.xlu0 %1509
    %1511 = vrot.lane.b32.xlu0 %v1304, 64
    %v1512 = vpop.permute.xlu0 %1511
    %v1515 = vsel %vm550, %v1505, 0
    %v1518 = vsel %vm550, %v1506, 0
    %v1521 = vsel %vm632, %v1512, 0
    %1523 = vmatprep.subr.bf16.mxu0 0
    %1524 = vmatpush1.bf16.msra.mxu0 %v1510
    %1525 = vmatprep.subr.bf16.mxu0 0
    %1526 = vmatpush1.bf16.msra.mxu0 %v1521
    %1527 = vmatprep.subr.bf16.mxu0 0
    %1528 = vmatpush1.bf16.msra.mxu0 0
    %1529 = vmatprep.subr.bf16.mxu0 0
    %1530 = vmatpush1.bf16.msra.mxu0 0
    %1531 = vmatprep.subr.bf16.mxu0 0
    %1532 = vmatpush1.bf16.msra.mxu0 0
    %1533 = vmatprep.subr.bf16.mxu0 0
    %1534 = vmatpush1.bf16.msra.mxu0 0
    %1535 = vmatprep.subr.bf16.mxu0 0
    %1536 = vmatpush1.bf16.msra.mxu0 0
    %1537 = vmatprep.subr.bf16.mxu0 0
    %1538 = vmatpush1.bf16.msra.mxu0 0
    %1539 = vmatprep.subr.bf16.mxu0 0
    %1540 = vmatpush1.bf16.msra.mxu0 0
    %1541 = vmatprep.subr.bf16.mxu0 0
    %1542 = vmatpush1.bf16.msra.mxu0 0
    %1543 = vmatprep.subr.bf16.mxu0 0
    %1544 = vmatpush1.bf16.msra.mxu0 0
    %1545 = vmatprep.subr.bf16.mxu0 0
    %1546 = vmatpush1.bf16.msra.mxu0 0
    %1547 = vmatprep.subr.bf16.mxu0 0
    %1548 = vmatpush1.bf16.msra.mxu0 0
    %1549 = vmatprep.subr.bf16.mxu0 0
    %1550 = vmatpush1.bf16.msra.mxu0 0
    %1551 = vmatprep.subr.bf16.mxu0 0
    %1552 = vmatpush1.bf16.msra.mxu0 0
    %1553 = vmatprep.subr.bf16.mxu0 0
    %1554 = vmatpush1.bf16.msra.mxu0 0
    %1555 = vmatprep.mubr.bf16.mxu0 0
    %1556 = vmatmul.mubr.bf16.gmra.mrb[0].mxu0 %v1515
    %v1557 = vpop.f32.mrb[0].mxu0
    %v1558 = vadd.f32 0.0, %v1557
    %v1559 = vpop.f32.mrb[0].mxu0
    %v1560 = vpop.f32.mrb[0].mxu0
    %v1561 = vadd.f32 0.0, %v1560
    %v1562 = vpop.f32.mrb[0].mxu0
    %1563 = vmatprep.mubr.bf16.mxu0 0
    %1564 = vmatmul.mubr.bf16.gmra.mrb[0].mxu0 %v1518
    %v1565 = vpop.f32.mrb[0].mxu0
    %v1566 = vadd.f32 0.0, %v1565
    %v1567 = vpop.f32.mrb[0].mxu0
    %v1568 = vpop.f32.mrb[0].mxu0
    %v1569 = vpop.f32.mrb[0].mxu0
    %1570 = vdwg.mxu0
    %1571 = vrot.lane.b32.xlu0 %v1305, 64
    %v1572 = vpop.permute.xlu0 %1571
    %1573 = vrot.lane.b32.xlu0 %v1306, 64
    %v1574 = vpop.permute.xlu0 %1573
    %v1577 = vsel %vm550, %v1507, 0
    %v1580 = vsel %vm550, %v1508, 0
    %v1583 = vsel %vm632, %v1574, 0
    %1585 = vmatprep.subr.bf16.mxu0 0
    %1586 = vmatpush1.bf16.msra.mxu0 %v1572
    %1587 = vmatprep.subr.bf16.mxu0 0
    %1588 = vmatpush1.bf16.msra.mxu0 %v1583
    %1589 = vmatprep.subr.bf16.mxu0 0
    %1590 = vmatpush1.bf16.msra.mxu0 0
    %1591 = vmatprep.subr.bf16.mxu0 0
    %1592 = vmatpush1.bf16.msra.mxu0 0
    %1593 = vmatprep.subr.bf16.mxu0 0
    %1594 = vmatpush1.bf16.msra.mxu0 0
    %1595 = vmatprep.subr.bf16.mxu0 0
    %1596 = vmatpush1.bf16.msra.mxu0 0
    %1597 = vmatprep.subr.bf16.mxu0 0
    %1598 = vmatpush1.bf16.msra.mxu0 0
    %1599 = vmatprep.subr.bf16.mxu0 0
    %1600 = vmatpush1.bf16.msra.mxu0 0
    %1601 = vmatprep.subr.bf16.mxu0 0
    %1602 = vmatpush1.bf16.msra.mxu0 0
    %1603 = vmatprep.subr.bf16.mxu0 0
    %1604 = vmatpush1.bf16.msra.mxu0 0
    %1605 = vmatprep.subr.bf16.mxu0 0
    %1606 = vmatpush1.bf16.msra.mxu0 0
    %1607 = vmatprep.subr.bf16.mxu0 0
    %1608 = vmatpush1.bf16.msra.mxu0 0
    %1609 = vmatprep.subr.bf16.mxu0 0
    %1610 = vmatpush1.bf16.msra.mxu0 0
    %1611 = vmatprep.subr.bf16.mxu0 0
    %1612 = vmatpush1.bf16.msra.mxu0 0
    %1613 = vmatprep.subr.bf16.mxu0 0
    %1614 = vmatpush1.bf16.msra.mxu0 0
    %1615 = vmatprep.subr.bf16.mxu0 0
    %1616 = vmatpush1.bf16.msra.mxu0 0
    %1617 = vmatprep.mubr.bf16.mxu0 0
    %1618 = vmatmul.mubr.bf16.gmra.mrb[0].mxu0 %v1577
    %v1619 = vpop.f32.mrb[0].mxu0
    %v1620 = vadd.f32 0.0, %v1619
    %v1621 = vpop.f32.mrb[0].mxu0
    %v1622 = vpop.f32.mrb[0].mxu0
    %v1623 = vadd.f32 0.0, %v1622
    %v1624 = vpop.f32.mrb[0].mxu0
    %1625 = vmatprep.mubr.bf16.mxu0 0
    %1626 = vmatmul.mubr.bf16.gmra.mrb[0].mxu0 %v1580
    %v1627 = vpop.f32.mrb[0].mxu0
    %v1628 = vadd.f32 0.0, %v1627
    %v1629 = vpop.f32.mrb[0].mxu0
    %v1630 = vpop.f32.mrb[0].mxu0
    %v1631 = vpop.f32.mrb[0].mxu0
    %1632 = vdwg.mxu0
    %1636 = vrot.lane.b32.xlu0 %v1620, 16
    %v1637 = vpop.permute.xlu0 %1636
    %1638 = vrot.lane.b32.xlu0 %v1623, 16
    %v1639 = vpop.permute.xlu0 %1638
    %1640 = vrot.lane.b32.xlu0 %v1628, 16
    %v1641 = vpop.permute.xlu0 %1640
    %v1645 = vsel %vm423, %v1558, %v1637
    %v1646 = vsel %vm423, %v1561, %v1639
    %v1647 = vsel %vm423, %v1566, %v1641
    %v1648 = vpack.c.bf16 %v1645, %v1645
    %v1649 = vld [vmem:[#allocation14] sm:$0xf]
    %v1650 = vld [vmem:[#allocation14 + $0x4] sm:$0xf]
    %v1651 = vld [vmem:[#allocation14 + $0x8] sm:$0xf]
    %v1652 = vld [vmem:[#allocation14 + $0xc] sm:$0xf]
    %v1653 = vld [vmem:[%s13] sm:$0x1]
    %v1655 = vlaneseq
    %v1656 = vshrl.u32 %v1655, 7
    %v1657 = vsub.s32 0, %v1656
    %v1658 = vrot.slane %v1653, %v1657
    %v1664 = vunpack.c.l.b16 %v1649
    %v1665 = vunpack.c.l.b16 %v1650
    %v1666 = vunpack.c.l.b16 %v1651
    %v1667 = vunpack.c.l.b16 %v1652
    %v1668 = vpack.c.b16 %v1665, %v1664
    %v1669 = vpack.c.b16 %v1667, %v1666
    %v1673 = vsel %vm200, %v1648, 0
    %1675 = vmatprep.subr.bf16.mxu0 0
    %1676 = vmatpush1.bf16.msra.mxu0 %v1668
    %1677 = vmatprep.subr.bf16.mxu0 0
    %1678 = vmatpush1.bf16.msra.mxu0 %v1669
    %1679 = vmatprep.subr.bf16.mxu0 0
    %1680 = vmatpush1.bf16.msra.mxu0 0
    %1681 = vmatprep.subr.bf16.mxu0 0
    %1682 = vmatpush1.bf16.msra.mxu0 0
    %1683 = vmatprep.subr.bf16.mxu0 0
    %1684 = vmatpush1.bf16.msra.mxu0 0
    %1685 = vmatprep.subr.bf16.mxu0 0
    %1686 = vmatpush1.bf16.msra.mxu0 0
    %1687 = vmatprep.subr.bf16.mxu0 0
    %1688 = vmatpush1.bf16.msra.mxu0 0
    %1689 = vmatprep.subr.bf16.mxu0 0
    %1690 = vmatpush1.bf16.msra.mxu0 0
    %1691 = vmatprep.subr.bf16.mxu0 0
    %1692 = vmatpush1.bf16.msra.mxu0 0
    %1693 = vmatprep.subr.bf16.mxu0 0
    %1694 = vmatpush1.bf16.msra.mxu0 0
    %1695 = vmatprep.subr.bf16.mxu0 0
    %1696 = vmatpush1.bf16.msra.mxu0 0
    %1697 = vmatprep.subr.bf16.mxu0 0
    %1698 = vmatpush1.bf16.msra.mxu0 0
    %1699 = vmatprep.subr.bf16.mxu0 0
    %1700 = vmatpush1.bf16.msra.mxu0 0
    %1701 = vmatprep.subr.bf16.mxu0 0
    %1702 = vmatpush1.bf16.msra.mxu0 0
    %1703 = vmatprep.subr.bf16.mxu0 0
    %1704 = vmatpush1.bf16.msra.mxu0 0
    %1705 = vmatprep.subr.bf16.mxu0 0
    %1706 = vmatpush1.bf16.msra.mxu0 0
    %1707 = vmatprep.mubr.bf16.mxu0 0
    %1708 = vmatmul.mubr.bf16.gmra.mrb[0].mxu0 %v1673
    %v1709 = vpop.f32.mrb[0].mxu0
    %v1710 = vadd.f32 %v1658, %v1709
    %v1711 = vpop.f32.mrb[0].mxu0
    %v1712 = vpop.f32.mrb[0].mxu0
    %v1713 = vpop.f32.mrb[0].mxu0
    %1714 = vdwg.mxu0
    %v1715 = vsel %vm200, %v1710, 0.0
    %1716 = vadd.xlane.f32.xlu0 %v1715
    %v1717 = vpop.xlane.xlu0 %1716
    %v1718 = vmul.f32 %v1717, %v831
    %v1719 = vsub.f32 %v1710, %v1718
    %v1720 = vmul.f32 %v1719, %v1719
    %v1721 = vsel %vm200, %v1720, 0.0
    %1722 = vadd.xlane.f32.xlu0 %v1721
    %v1723 = vpop.xlane.xlu0 %1722
    %v1724 = vmul.f32 %v1723, %v831
    %v1725 = vadd.f32 %v1724, 1e-05
    %v1726 = vrsqrt.pop %v1725
    %v1727 = vmul.f32 %v1719, %v1726
    %v1728 = vld [vmem:[%s14] sm:$0x1]
    %v1730 = vlaneseq
    %v1731 = vshrl.u32 %v1730, 7
    %v1732 = vsub.s32 0, %v1731
    %v1733 = vrot.slane %v1728, %v1732
    %v1735 = vmul.f32 %v1727, %v1733
    %v1736 = vld [vmem:[%s15] sm:$0x1]
    %v1738 = vlaneseq
    %v1739 = vshrl.u32 %v1738, 7
    %v1740 = vsub.s32 0, %v1739
    %v1741 = vrot.slane %v1736, %v1740
    %v1743 = vadd.f32 %v1735, %v1741
    %v1744 = vadd.f32 %v1743, %v858
    %v1745 = vpack.c.bf16 %v1646, %v1646
    %s1746 = scalar_lea.vmem [#allocation14], 16
    %v1747 = vld [vmem:[%s1746] sm:$0xf]
    %v1748 = vld [vmem:[%s1746 + $0x4] sm:$0xf]
    %v1749 = vld [vmem:[%s1746 + $0x8] sm:$0xf]
    %v1750 = vld [vmem:[%s1746 + $0xc] sm:$0xf]
    %s1751 = scalar_lea.vmem %s13, 1
    %v1752 = vld [vmem:[%s1751] sm:$0x1]
    %v1754 = vlaneseq
    %v1755 = vshrl.u32 %v1754, 7
    %v1756 = vsub.s32 0, %v1755
    %v1757 = vrot.slane %v1752, %v1756
    %v1763 = vunpack.c.l.b16 %v1747
    %v1764 = vunpack.c.l.b16 %v1748
    %v1765 = vunpack.c.l.b16 %v1749
    %v1766 = vunpack.c.l.b16 %v1750
    %v1767 = vpack.c.b16 %v1764, %v1763
    %v1768 = vpack.c.b16 %v1766, %v1765
    %v1772 = vsel %vm200, %v1745, 0
    %1774 = vmatprep.subr.bf16.mxu0 0
    %1775 = vmatpush1.bf16.msra.mxu0 %v1767
    %1776 = vmatprep.subr.bf16.mxu0 0
    %1777 = vmatpush1.bf16.msra.mxu0 %v1768
    %1778 = vmatprep.subr.bf16.mxu0 0
    %1779 = vmatpush1.bf16.msra.mxu0 0
    %1780 = vmatprep.subr.bf16.mxu0 0
    %1781 = vmatpush1.bf16.msra.mxu0 0
    %1782 = vmatprep.subr.bf16.mxu0 0
    %1783 = vmatpush1.bf16.msra.mxu0 0
    %1784 = vmatprep.subr.bf16.mxu0 0
    %1785 = vmatpush1.bf16.msra.mxu0 0
    %1786 = vmatprep.subr.bf16.mxu0 0
    %1787 = vmatpush1.bf16.msra.mxu0 0
    %1788 = vmatprep.subr.bf16.mxu0 0
    %1789 = vmatpush1.bf16.msra.mxu0 0
    %1790 = vmatprep.subr.bf16.mxu0 0
    %1791 = vmatpush1.bf16.msra.mxu0 0
    %1792 = vmatprep.subr.bf16.mxu0 0
    %1793 = vmatpush1.bf16.msra.mxu0 0
    %1794 = vmatprep.subr.bf16.mxu0 0
    %1795 = vmatpush1.bf16.msra.mxu0 0
    %1796 = vmatprep.subr.bf16.mxu0 0
    %1797 = vmatpush1.bf16.msra.mxu0 0
    %1798 = vmatprep.subr.bf16.mxu0 0
    %1799 = vmatpush1.bf16.msra.mxu0 0
    %1800 = vmatprep.subr.bf16.mxu0 0
    %1801 = vmatpush1.bf16.msra.mxu0 0
    %1802 = vmatprep.subr.bf16.mxu0 0
    %1803 = vmatpush1.bf16.msra.mxu0 0
    %1804 = vmatprep.subr.bf16.mxu0 0
    %1805 = vmatpush1.bf16.msra.mxu0 0
    %1806 = vmatprep.mubr.bf16.mxu0 0
    %1807 = vmatmul.mubr.bf16.gmra.mrb[0].mxu0 %v1772
    %v1808 = vpop.f32.mrb[0].mxu0
    %v1809 = vadd.f32 %v1757, %v1808
    %v1810 = vpop.f32.mrb[0].mxu0
    %v1811 = vpop.f32.mrb[0].mxu0
    %v1812 = vpop.f32.mrb[0].mxu0
    %1813 = vdwg.mxu0
    %v1814 = vsel %vm200, %v1809, 0.0
    %1815 = vadd.xlane.f32.xlu0 %v1814
    %v1816 = vpop.xlane.xlu0 %1815
    %v1817 = vmul.f32 %v1816, %v831
    %v1818 = vsub.f32 %v1809, %v1817
    %v1819 = vmul.f32 %v1818, %v1818
    %v1820 = vsel %vm200, %v1819, 0.0
    %1821 = vadd.xlane.f32.xlu0 %v1820
    %v1822 = vpop.xlane.xlu0 %1821
    %v1823 = vmul.f32 %v1822, %v831
    %v1824 = vadd.f32 %v1823, 1e-05
    %v1825 = vrsqrt.pop %v1824
    %v1826 = vmul.f32 %v1818, %v1825
    %s1827 = scalar_lea.vmem %s14, 1
    %v1828 = vld [vmem:[%s1827] sm:$0x1]
    %v1830 = vlaneseq
    %v1831 = vshrl.u32 %v1830, 7
    %v1832 = vsub.s32 0, %v1831
    %v1833 = vrot.slane %v1828, %v1832
    %v1835 = vmul.f32 %v1826, %v1833
    %s1836 = scalar_lea.vmem %s15, 1
    %v1837 = vld [vmem:[%s1836] sm:$0x1]
    %v1839 = vlaneseq
    %v1840 = vshrl.u32 %v1839, 7
    %v1841 = vsub.s32 0, %v1840
    %v1842 = vrot.slane %v1837, %v1841
    %v1844 = vadd.f32 %v1835, %v1842
    %v1845 = vadd.f32 %v1844, %v959
    %v1846 = vpack.c.bf16 %v1647, %v1647
    %s1847 = scalar_lea.vmem [#allocation14], 32
    %v1848 = vld [vmem:[%s1847] sm:$0xf]
    %v1849 = vld [vmem:[%s1847 + $0x4] sm:$0xf]
    %v1850 = vld [vmem:[%s1847 + $0x8] sm:$0xf]
    %v1851 = vld [vmem:[%s1847 + $0xc] sm:$0xf]
    %s1852 = scalar_lea.vmem %s13, 2
    %v1853 = vld [vmem:[%s1852] sm:$0x1]
    %v1855 = vlaneseq
    %v1856 = vshrl.u32 %v1855, 7
    %v1857 = vsub.s32 0, %v1856
    %v1858 = vrot.slane %v1853, %v1857
    %v1864 = vunpack.c.l.b16 %v1848
    %v1865 = vunpack.c.l.b16 %v1849
    %v1866 = vunpack.c.l.b16 %v1850
    %v1867 = vunpack.c.l.b16 %v1851
    %v1868 = vpack.c.b16 %v1865, %v1864
    %v1869 = vpack.c.b16 %v1867, %v1866
    %v1873 = vsel %vm200, %v1846, 0
    %1875 = vmatprep.subr.bf16.mxu0 0
    %1876 = vmatpush1.bf16.msra.mxu0 %v1868
    %1877 = vmatprep.subr.bf16.mxu0 0
    %1878 = vmatpush1.bf16.msra.mxu0 %v1869
    %1879 = vmatprep.subr.bf16.mxu0 0
    %1880 = vmatpush1.bf16.msra.mxu0 0
    %1881 = vmatprep.subr.bf16.mxu0 0
    %1882 = vmatpush1.bf16.msra.mxu0 0
    %1883 = vmatprep.subr.bf16.mxu0 0
    %1884 = vmatpush1.bf16.msra.mxu0 0
    %1885 = vmatprep.subr.bf16.mxu0 0
    %1886 = vmatpush1.bf16.msra.mxu0 0
    %1887 = vmatprep.subr.bf16.mxu0 0
    %1888 = vmatpush1.bf16.msra.mxu0 0
    %1889 = vmatprep.subr.bf16.mxu0 0
    %1890 = vmatpush1.bf16.msra.mxu0 0
    %1891 = vmatprep.subr.bf16.mxu0 0
    %1892 = vmatpush1.bf16.msra.mxu0 0
    %1893 = vmatprep.subr.bf16.mxu0 0
    %1894 = vmatpush1.bf16.msra.mxu0 0
    %1895 = vmatprep.subr.bf16.mxu0 0
    %1896 = vmatpush1.bf16.msra.mxu0 0
    %1897 = vmatprep.subr.bf16.mxu0 0
    %1898 = vmatpush1.bf16.msra.mxu0 0
    %1899 = vmatprep.subr.bf16.mxu0 0
    %1900 = vmatpush1.bf16.msra.mxu0 0
    %1901 = vmatprep.subr.bf16.mxu0 0
    %1902 = vmatpush1.bf16.msra.mxu0 0
    %1903 = vmatprep.subr.bf16.mxu0 0
    %1904 = vmatpush1.bf16.msra.mxu0 0
    %1905 = vmatprep.subr.bf16.mxu0 0
    %1906 = vmatpush1.bf16.msra.mxu0 0
    %1907 = vmatprep.mubr.bf16.mxu0 0
    %1908 = vmatmul.mubr.bf16.gmra.mrb[0].mxu0 %v1873
    %v1909 = vpop.f32.mrb[0].mxu0
    %v1910 = vadd.f32 %v1858, %v1909
    %v1911 = vpop.f32.mrb[0].mxu0
    %v1912 = vpop.f32.mrb[0].mxu0
    %v1913 = vpop.f32.mrb[0].mxu0
    %1914 = vdwg.mxu0
    %v1915 = vsel %vm200, %v1910, 0.0
    %1916 = vadd.xlane.f32.xlu0 %v1915
    %v1917 = vpop.xlane.xlu0 %1916
    %v1918 = vmul.f32 %v1917, %v831
    %v1919 = vsub.f32 %v1910, %v1918
    %v1920 = vmul.f32 %v1919, %v1919
    %v1921 = vsel %vm200, %v1920, 0.0
    %1922 = vadd.xlane.f32.xlu0 %v1921
    %v1923 = vpop.xlane.xlu0 %1922
    %v1924 = vmul.f32 %v1923, %v831
    %v1925 = vadd.f32 %v1924, 1e-05
    %v1926 = vrsqrt.pop %v1925
    %v1927 = vmul.f32 %v1919, %v1926
    %s1928 = scalar_lea.vmem %s14, 2
    %v1929 = vld [vmem:[%s1928] sm:$0x1]
    %v1931 = vlaneseq
    %v1932 = vshrl.u32 %v1931, 7
    %v1933 = vsub.s32 0, %v1932
    %v1934 = vrot.slane %v1929, %v1933
    %v1936 = vmul.f32 %v1927, %v1934
    %s1937 = scalar_lea.vmem %s15, 2
    %v1938 = vld [vmem:[%s1937] sm:$0x1]
    %v1940 = vlaneseq
    %v1941 = vshrl.u32 %v1940, 7
    %v1942 = vsub.s32 0, %v1941
    %v1943 = vrot.slane %v1938, %v1942
    %v1945 = vadd.f32 %v1936, %v1943
    %v1946 = vadd.f32 %v1945, %v1060
    %1947 = vst.msk [vmem:[#allocation16] sm:$0xff] %vm200, %v1744
    %1948 = vst.msk [vmem:[#allocation16 + $0x8] sm:$0xff] %vm200, %v1845
    %1949 = vst.msk [vmem:[#allocation16 + $0x10] sm:$0xff] %vm200, %v1946
    // Predicated region
    $region98: #{tpu_custom_call.1} parent=1 // pred_check
      _
    $region99: #{tpu_custom_call.1} parent=1 // pred_check_branch
      %1951 = sbr.rel (0) target = $region101
    $region100: #{tpu_custom_call.1} parent=1 // pred_region
      %s1953 = ssub.s32 384, 384
      %1954 = vsyncadd [#allocation4], %s1953
      %s1955 = sshll.u32 [#allocation16], 4
      %s1956 = int_to_ptr.vmem [resolvable:$true] %s1955
      %1961 = dma.vmem_to_hbm [thread:$0]  %s1956, 384, %s16, [#allocation4], 128, 128, 8
    $region101: #{tpu_custom_call.1} parent=1 // pred_fallthru
      _
    // Predicated region
    $region102: #{tpu_custom_call.1} parent=1 // pred_check
      _
    $region103: #{tpu_custom_call.1} parent=1 // pred_check_branch
      %1963 = sbr.rel (0) target = $region105
    $region104: #{tpu_custom_call.1} parent=1 // pred_region
      %1964 = dma.done [#allocation4], 384
    $region105: #{tpu_custom_call.1} parent=1 // pred_fallthru
      _
    %1965 = vsyncpa [#allocation3], 1
    %1966 = vsyncpa [#allocation6], 1
    %1967 = vsyncpa [#allocation9], 1
    %1968 = vsyncpa [#allocation12], 1
    %1969 = vsyncpa [#allocation15], 1
    %1970 = vsyncpa [#allocation4], 1

</llo_original>
